<compile_context>
chip_gen: v7x
topology: tpu7x:2x2x1
jax: 0.10.0
libtpu: 0.0.40
codegen_flags: <defaults>
</compile_context>

<pallas_src>
import functools

import jax
import jax.numpy as jnp
from jax import lax
from jax.experimental import pallas as pl
from jax.experimental.pallas import tpu as pltpu

EPS = 1e-5
LANE = 128


def _round_up(x, m):
    return (x + m - 1) // m * m


# ------------------------------------------------------------------
# Fused Pallas kernel: expand(1x1) -> depthwise(3x3) -> project(1x1)
# ------------------------------------------------------------------
def _fused_kernel(*refs, H, W, Ho, Wo, stride, use_res, has_expand):
    if has_expand:
        (x_ref, w1_ref, b1_ref, wd_ref, b2_ref, w3_ref, b3_ref,
         o_ref, hpad_ref) = refs
    else:
        (x_ref, wd_ref, b2_ref, w3_ref, b3_ref, o_ref, hpad_ref) = refs
        w1_ref = b1_ref = None

    Cin_p = x_ref.shape[-1]
    Hid_p = hpad_ref.shape[-1]
    Cout_p = o_ref.shape[-1]

    x = x_ref[0]                                        # (H, W, Cin_p) bf16

    # ---- stage 1: expand 1x1 conv (+ folded BN) + ReLU6, stays in VMEM ----
    if has_expand:
        h = jnp.dot(x.reshape(H * W, Cin_p), w1_ref[...],
                    preferred_element_type=jnp.float32)     # MXU, f32 acc
        h = jnp.clip(h + b1_ref[...], 0.0, 6.0)
    else:
        h = x.reshape(H * W, Cin_p).astype(jnp.float32)      # Cin_p == Hid_p

    # write the interior of the zero-padded hidden tile; the 1-pixel border is
    # the depthwise conv's zero padding (must be 0, NOT relu6(bias)).
    hpad_ref[1:H + 1, 1:W + 1, :] = h.reshape(H, W, Hid_p)
    zrow = jnp.zeros((1, W + 2, Hid_p), jnp.float32)
    hpad_ref[0:1, :, :] = zrow
    hpad_ref[H + 1:H + 2, :, :] = zrow
    zcol = jnp.zeros((H + 2, 1, Hid_p), jnp.float32)
    hpad_ref[:, 0:1, :] = zcol
    hpad_ref[:, W + 1:W + 2, :] = zcol

    # ---- stage 2: depthwise 3x3 (+ folded BN) + ReLU6 (VPU) ----
    wd = wd_ref[...]                                    # (3, 3, Hid_p) f32

    def tap(kh, kw):
        if stride == 1:
            return hpad_ref[kh:kh + Ho, kw:kw + Wo, :]
        return hpad_ref[pl.ds(kh, Ho, stride=stride),
                        pl.ds(kw, Wo, stride=stride), :]

    # init accumulator from the first tap with the bias folded in
    # (saves a full zeros + add pass on the VALU slot).
    acc = tap(0, 0) * wd[0, 0, :] + b2_ref[0, :]
    for kh in range(3):
        for kw in range(3):
            if kh == 0 and kw == 0:
                continue
            acc = acc + tap(kh, kw) * wd[kh, kw, :]
    dw = jnp.clip(acc, 0.0, 6.0).astype(jnp.bfloat16)   # bf16 feed to the MXU

    # ---- stage 3: project 1x1 conv (+ folded BN), fused residual ----
    y = jnp.dot(dw.reshape(Ho * Wo, Hid_p), w3_ref[...],
                preferred_element_type=jnp.float32)
    y = y + b3_ref[...]
    if use_res:
        # stride == 1 and inp == oup  =>  Ho == H, Wo == W, Cin_p == Cout_p
        y = y + x.reshape(H * W, Cout_p).astype(jnp.float32)
    o_ref[0] = y.reshape(Ho, Wo, Cout_p).astype(o_ref.dtype)


# ------------------------------------------------------------------
# BN folding / weight padding glue (plain JAX, runs once under jit)
# ------------------------------------------------------------------
def _fold_bn(gamma, beta, mean, var):
    scale = gamma / jnp.sqrt(var + EPS)
    bias = beta - mean * scale
    return scale, bias


def _fold_pointwise(w_oihw, bn, ci, co, ci_p, co_p):
    scale, bias = _fold_bn(*bn)
    w2 = (w_oihw[:, :, 0, 0] * scale[:, None]).T                    # (ci, co)
    w2 = jnp.pad(w2, ((0, ci_p - ci), (0, co_p - co))).astype(jnp.bfloat16)
    b = jnp.pad(bias, (0, co_p - co)).reshape(1, co_p).astype(jnp.float32)
    return w2, b


def _fold_depthwise(w_c133, bn, c, c_p):
    scale, bias = _fold_bn(*bn)
    wk = jnp.transpose(w_c133[:, 0], (1, 2, 0)) * scale[None, None, :]   # (3,3,c)
    wk = jnp.pad(wk, ((0, 0), (0, 0), (0, c_p - c))).astype(jnp.float32)
    b = jnp.pad(bias, (0, c_p - c)).reshape(1, c_p).astype(jnp.float32)
    return wk, b


# ------------------------------------------------------------------
# InvertedResidual forward (fused Pallas path)
# ------------------------------------------------------------------
def inverted_residual_forward(x_nchw, params, *, inp, oup, stride, expand_ratio):
    hidden = int(round(inp * expand_ratio))
    use_res = (stride == 1) and (inp == oup)
    has_expand = expand_ratio != 1

    N, _, H, W = x_nchw.shape
    Ho = (H + 2 - 3) // stride + 1
    Wo = (W + 2 - 3) // stride + 1

    # lane-dense channel padding (multiples of 128)
    Cin_p = _round_up(inp, LANE)
    Hid_p = _round_up(hidden, LANE)
    Cout_p = _round_up(oup, LANE)
    if not has_expand:                 # hidden == inp feeds straight into depthwise
        Cin_p = Hid_p = max(Cin_p, Hid_p)
    if use_res:                        # inp == oup; residual reuses the x tile
        Cin_p = Cout_p = max(Cin_p, Cout_p)
        if not has_expand:
            Hid_p = Cin_p

    # NCHW -> NHWC, pad channels, cast to bf16 (halves HBM traffic)
    x = jnp.transpose(x_nchw, (0, 2, 3, 1))
    x = jnp.pad(x, ((0, 0), (0, 0), (0, 0), (0, Cin_p - inp))).astype(jnp.bfloat16)

    # fold BN into conv weights, pad to lane-dense shapes
    wd, b2 = _fold_depthwise(params["w_dw"], params["bn2"], hidden, Hid_p)
    w3, b3 = _fold_pointwise(params["w_proj"], params["bn3"], hidden, oup,
                             Hid_p, Cout_p)

    in_specs = [pl.BlockSpec((1, H, W, Cin_p), lambda n: (n, 0, 0, 0))]
    args = [x]
    if has_expand:
        w1, b1 = _fold_pointwise(params["w_expand"], params["bn1"], inp, hidden,
                                 Cin_p, Hid_p)
        in_specs += [pl.BlockSpec((Cin_p, Hid_p), lambda n: (0, 0)),
                     pl.BlockSpec((1, Hid_p), lambda n: (0, 0))]
        args += [w1, b1]
    in_specs += [pl.BlockSpec((3, 3, Hid_p), lambda n: (0, 0, 0)),
                 pl.BlockSpec((1, Hid_p), lambda n: (0, 0)),
                 pl.BlockSpec((Hid_p, Cout_p), lambda n: (0, 0)),
                 pl.BlockSpec((1, Cout_p), lambda n: (0, 0))]
    args += [wd, b2, w3, b3]

    kernel = functools.partial(_fused_kernel, H=H, W=W, Ho=Ho, Wo=Wo,
                               stride=stride, use_res=use_res,
                               has_expand=has_expand)

    y = pl.pallas_call(
        kernel,
        out_shape=jax.ShapeDtypeStruct((N, Ho, Wo, Cout_p), jnp.bfloat16),
        grid=(N,),
        in_specs=in_specs,
        out_specs=pl.BlockSpec((1, Ho, Wo, Cout_p), lambda n: (n, 0, 0, 0)),
        scratch_shapes=[pltpu.VMEM((H + 2, W + 2, Hid_p), jnp.float32)],
        compiler_params=pltpu.CompilerParams(
            dimension_semantics=("parallel",),
            vmem_limit_bytes=32 * 1024 * 1024),
    )(*args)

    y = y[..., :oup]                                   # drop channel padding
    return jnp.transpose(y, (0, 3, 1, 2))              # NHWC -> NCHW (bf16)


# ------------------------------------------------------------------
# Deterministic parameter init (mirrors the torch module's shapes)
# ------------------------------------------------------------------
def _bn_init(key, c):
    k1, k2, k3, k4 = jax.random.split(key, 4)
    gamma = 1.0 + 0.1 * jax.random.normal(k1, (c,), jnp.float32)
    beta = 0.1 * jax.random.normal(k2, (c,), jnp.float32)
    mean = 0.1 * jax.random.normal(k3, (c,), jnp.float32)
    var = jax.random.uniform(k4, (c,), jnp.float32, 0.5, 1.5)
    return (gamma, beta, mean, var)


def init_params(key, inp, oup, expand_ratio):
    hidden = int(round(inp * expand_ratio))
    ks = jax.random.split(key, 6)
    params = {}
    if expand_ratio != 1:
        params["w_expand"] = 0.1 * jax.random.normal(ks[0], (hidden, inp, 1, 1), jnp.float32)
        params["bn1"] = _bn_init(ks[1], hidden)
    params["w_dw"] = 0.1 * jax.random.normal(ks[2], (hidden, 1, 3, 3), jnp.float32)
    params["bn2"] = _bn_init(ks[3], hidden)
    params["w_proj"] = 0.1 * jax.random.normal(ks[4], (oup, hidden, 1, 1), jnp.float32)
    params["bn3"] = _bn_init(ks[5], oup)
    return params


# ------------------------------------------------------------------
# Pure-JAX f32 reference (unfolded conv + BN), for correctness checking
# ------------------------------------------------------------------
def reference_forward(x, params, *, inp, oup, stride, expand_ratio):
    def bn(y, gamma, beta, mean, var):
        inv = 1.0 / jnp.sqrt(var + EPS)
        return (y - mean[None, :, None, None]) * (gamma * inv)[None, :, None, None] \
            + beta[None, :, None, None]

    dn = ("NCHW", "OIHW", "NCHW")
    h = x
    if expand_ratio != 1:
        h = lax.conv_general_dilated(h, params["w_expand"], (1, 1), [(0, 0), (0, 0)],
                                     dimension_numbers=dn)
        h = jnp.clip(bn(h, *params["bn1"]), 0.0, 6.0)
    h = lax.conv_general_dilated(h, params["w_dw"], (stride, stride), [(1, 1), (1, 1)],
                                 dimension_numbers=dn, feature_group_count=h.shape[1])
    h = jnp.clip(bn(h, *params["bn2"]), 0.0, 6.0)
    h = lax.conv_general_dilated(h, params["w_proj"], (1, 1), [(0, 0), (0, 0)],
                                 dimension_numbers=dn)
    h = bn(h, *params["bn3"])
    if stride == 1 and inp == oup:
        h = x + h
    return h


# ------------------------------------------------------------------
if __name__ == "__main__":
    inp, oup, stride, expand_ratio = 16, 16, 1, 6   # residual path (stride=1, inp==oup)
    N, H, W = 2, 16, 16

    key = jax.random.PRNGKey(0)
    kx, kp = jax.random.split(key)
    x = jax.random.normal(kx, (N, inp, H, W), jnp.float32)   # NCHW, like torch
    params = init_params(kp, inp, oup, expand_ratio)

    fwd = jax.jit(functools.partial(inverted_residual_forward, inp=inp, oup=oup,
                                    stride=stride, expand_ratio=expand_ratio))
    out = jax.block_until_ready(fwd(x, params))

    ref = jax.block_until_ready(
        reference_forward(x, params, inp=inp, oup=oup,
                          stride=stride, expand_ratio=expand_ratio))

    assert out.shape == ref.shape, (out.shape, ref.shape)
    diff = jnp.abs(out.astype(jnp.float32) - ref)
    max_err = float(jnp.max(diff))
    mean_err = float(jnp.mean(diff))
    # bf16 activations/weights/output with f32 accumulation -> loose abs tolerance
    assert max_err < 1e-1, f"max abs error {max_err}"
    assert mean_err < 1e-2, f"mean abs error {mean_err}"

    print("KERNEL_OK")
</pallas_src>

<mosaic_0001>
module attributes {stable_mosaic.version = 11 : i64} {
  func.func @_fused_kernel(%arg0: i32, %arg1: memref<1x16x16x128xbf16, #tpu.memory_space<vmem>>, %arg2: memref<128x128xbf16, #tpu.memory_space<vmem>>, %arg3: memref<1x128xf32, #tpu.memory_space<vmem>>, %arg4: memref<3x3x128xf32, #tpu.memory_space<vmem>>, %arg5: memref<1x128xf32, #tpu.memory_space<vmem>>, %arg6: memref<128x128xbf16, #tpu.memory_space<vmem>>, %arg7: memref<1x128xf32, #tpu.memory_space<vmem>>, %arg8: memref<1x16x16x128xbf16, #tpu.memory_space<vmem>>, %arg9: memref<18x18x128xf32, #tpu.memory_space<vmem>>) attributes {dimension_semantics = [#tpu.dimension_semantics<parallel>], iteration_bounds = array<i64: 2>, scalar_prefetch = 0 : i64, scratch_operands = 1 : i64, tpu.core_type = #tpu.core_type<tc>, window_params = [{transform_indices = @transform_0, window_bounds = array<i64: 1, 16, 16, 128>}, {pipeline_mode = #tpu.pipeline_mode<synchronous>, transform_indices = @transform_1, window_bounds = array<i64: 128, 128>}, {pipeline_mode = #tpu.pipeline_mode<synchronous>, transform_indices = @transform_2, window_bounds = array<i64: 1, 128>}, {pipeline_mode = #tpu.pipeline_mode<synchronous>, transform_indices = @transform_3, window_bounds = array<i64: 3, 3, 128>}, {pipeline_mode = #tpu.pipeline_mode<synchronous>, transform_indices = @transform_4, window_bounds = array<i64: 1, 128>}, {pipeline_mode = #tpu.pipeline_mode<synchronous>, transform_indices = @transform_5, window_bounds = array<i64: 128, 128>}, {pipeline_mode = #tpu.pipeline_mode<synchronous>, transform_indices = @transform_6, window_bounds = array<i64: 1, 128>}, {transform_indices = @transform_7, window_bounds = array<i64: 1, 16, 16, 128>}]} {
    %c0 = arith.constant 0 : index
    %c0_0 = arith.constant 0 : index
    %c0_1 = arith.constant 0 : index
    %c0_2 = arith.constant 0 : index
    %0 = vector.load %arg1[%c0, %c0_0, %c0_1, %c0_2] : memref<1x16x16x128xbf16, #tpu.memory_space<vmem>>, vector<1x16x16x128xbf16>
    %1 = vector.shape_cast %0 : vector<1x16x16x128xbf16> to vector<16x16x128xbf16>
    %2 = vector.shape_cast %1 : vector<16x16x128xbf16> to vector<256x128xbf16>
    %c0_3 = arith.constant 0 : index
    %c0_4 = arith.constant 0 : index
    %3 = vector.load %arg2[%c0_3, %c0_4] : memref<128x128xbf16, #tpu.memory_space<vmem>>, vector<128x128xbf16>
    %cst = arith.constant dense<0.000000e+00> : vector<256x128xf32>
    %4 = tpu.matmul %2, %3, %cst {dimension_numbers = #tpu.dot_dimension_numbers<[1], [0], [0], [1], [0, 0, 1, 1], [], []>} : vector<256x128xbf16>, vector<128x128xbf16>, vector<256x128xf32> -> vector<256x128xf32>
    %c0_5 = arith.constant 0 : index
    %c0_6 = arith.constant 0 : index
    %5 = vector.load %arg3[%c0_5, %c0_6] : memref<1x128xf32, #tpu.memory_space<vmem>>, vector<1x128xf32>
    %6 = vector.broadcast %5 : vector<1x128xf32> to vector<256x128xf32>
    %7 = arith.addf %4, %6 : vector<256x128xf32>
    %cst_7 = arith.constant 0.000000e+00 : f32
    %cst_8 = arith.constant 6.000000e+00 : f32
    %8 = vector.broadcast %cst_7 : f32 to vector<256x128xf32>
    %9 = arith.maximumf %8, %7 : vector<256x128xf32>
    %10 = vector.broadcast %cst_8 : f32 to vector<256x128xf32>
    %11 = arith.minimumf %10, %9 : vector<256x128xf32>
    %12 = vector.shape_cast %11 : vector<256x128xf32> to vector<16x16x128xf32>
    %c1 = arith.constant 1 : index
    %c1_9 = arith.constant 1 : index
    %c0_10 = arith.constant 0 : index
    %13 = vector.load %arg9[%c1, %c1_9, %c0_10] : memref<18x18x128xf32, #tpu.memory_space<vmem>>, vector<16x16x128xf32>
    tpu.vector_store %arg9[%c1, %c1_9, %c0_10], %12 {strides = array<i32>} : memref<18x18x128xf32, #tpu.memory_space<vmem>>, vector<16x16x128xf32>,
    %cst_11 = arith.constant 0.000000e+00 : f32
    %14 = vector.broadcast %cst_11 : f32 to vector<1x18x128xf32>
    %c0_12 = arith.constant 0 : index
    %c0_13 = arith.constant 0 : index
    %c0_14 = arith.constant 0 : index
    %15 = vector.load %arg9[%c0_12, %c0_13, %c0_14] : memref<18x18x128xf32, #tpu.memory_space<vmem>>, vector<1x18x128xf32>
    tpu.vector_store %arg9[%c0_12, %c0_13, %c0_14], %14 {strides = array<i32>} : memref<18x18x128xf32, #tpu.memory_space<vmem>>, vector<1x18x128xf32>,
    %c17 = arith.constant 17 : index
    %c0_15 = arith.constant 0 : index
    %c0_16 = arith.constant 0 : index
    %16 = vector.load %arg9[%c17, %c0_15, %c0_16] : memref<18x18x128xf32, #tpu.memory_space<vmem>>, vector<1x18x128xf32>
    tpu.vector_store %arg9[%c17, %c0_15, %c0_16], %14 {strides = array<i32>} : memref<18x18x128xf32, #tpu.memory_space<vmem>>, vector<1x18x128xf32>,
    %cst_17 = arith.constant 0.000000e+00 : f32
    %17 = vector.broadcast %cst_17 : f32 to vector<18x1x128xf32>
    %c0_18 = arith.constant 0 : index
    %c0_19 = arith.constant 0 : index
    %c0_20 = arith.constant 0 : index
    %18 = vector.load %arg9[%c0_18, %c0_19, %c0_20] : memref<18x18x128xf32, #tpu.memory_space<vmem>>, vector<18x1x128xf32>
    tpu.vector_store %arg9[%c0_18, %c0_19, %c0_20], %17 {strides = array<i32>} : memref<18x18x128xf32, #tpu.memory_space<vmem>>, vector<18x1x128xf32>,
    %c0_21 = arith.constant 0 : index
    %c17_22 = arith.constant 17 : index
    %c0_23 = arith.constant 0 : index
    %19 = vector.load %arg9[%c0_21, %c17_22, %c0_23] : memref<18x18x128xf32, #tpu.memory_space<vmem>>, vector<18x1x128xf32>
    tpu.vector_store %arg9[%c0_21, %c17_22, %c0_23], %17 {strides = array<i32>} : memref<18x18x128xf32, #tpu.memory_space<vmem>>, vector<18x1x128xf32>,
    %c0_24 = arith.constant 0 : index
    %c0_25 = arith.constant 0 : index
    %c0_26 = arith.constant 0 : index
    %20 = vector.load %arg4[%c0_24, %c0_25, %c0_26] : memref<3x3x128xf32, #tpu.memory_space<vmem>>, vector<3x3x128xf32>
    %c0_27 = arith.constant 0 : index
    %c0_28 = arith.constant 0 : index
    %c0_29 = arith.constant 0 : index
    %21 = vector.load %arg9[%c0_27, %c0_28, %c0_29] : memref<18x18x128xf32, #tpu.memory_space<vmem>>, vector<16x16x128xf32>
    %22 = vector.extract_strided_slice %20 {offsets = [0, 0, 0], sizes = [1, 1, 128], strides = [1, 1, 1]} : vector<3x3x128xf32> to vector<1x1x128xf32>
    %23 = vector.shape_cast %22 : vector<1x1x128xf32> to vector<128xf32>
    %24 = vector.shape_cast %23 : vector<128xf32> to vector<1x1x128xf32>
    %25 = vector.broadcast %24 : vector<1x1x128xf32> to vector<16x16x128xf32>
    %26 = arith.mulf %21, %25 : vector<16x16x128xf32>
    %c0_30 = arith.constant 0 : index
    %c0_31 = arith.constant 0 : index
    %27 = vector.load %arg5[%c0_30, %c0_31] : memref<1x128xf32, #tpu.memory_space<vmem>>, vector<1x128xf32>
    %28 = vector.shape_cast %27 : vector<1x128xf32> to vector<128xf32>
    %29 = vector.shape_cast %28 : vector<128xf32> to vector<1x1x128xf32>
    %30 = vector.broadcast %29 : vector<1x1x128xf32> to vector<16x16x128xf32>
    %31 = arith.addf %26, %30 : vector<16x16x128xf32>
    %c0_32 = arith.constant 0 : index
    %c1_33 = arith.constant 1 : index
    %c0_34 = arith.constant 0 : index
    %32 = vector.load %arg9[%c0_32, %c1_33, %c0_34] : memref<18x18x128xf32, #tpu.memory_space<vmem>>, vector<16x16x128xf32>
    %33 = vector.extract_strided_slice %20 {offsets = [0, 1, 0], sizes = [1, 1, 128], strides = [1, 1, 1]} : vector<3x3x128xf32> to vector<1x1x128xf32>
    %34 = vector.shape_cast %33 : vector<1x1x128xf32> to vector<128xf32>
    %35 = vector.shape_cast %34 : vector<128xf32> to vector<1x1x128xf32>
    %36 = vector.broadcast %35 : vector<1x1x128xf32> to vector<16x16x128xf32>
    %37 = arith.mulf %32, %36 : vector<16x16x128xf32>
    %38 = arith.addf %31, %37 : vector<16x16x128xf32>
    %c0_35 = arith.constant 0 : index
    %c2 = arith.constant 2 : index
    %c0_36 = arith.constant 0 : index
    %39 = vector.load %arg9[%c0_35, %c2, %c0_36] : memref<18x18x128xf32, #tpu.memory_space<vmem>>, vector<16x16x128xf32>
    %40 = vector.extract_strided_slice %20 {offsets = [0, 2, 0], sizes = [1, 1, 128], strides = [1, 1, 1]} : vector<3x3x128xf32> to vector<1x1x128xf32>
    %41 = vector.shape_cast %40 : vector<1x1x128xf32> to vector<128xf32>
    %42 = vector.shape_cast %41 : vector<128xf32> to vector<1x1x128xf32>
    %43 = vector.broadcast %42 : vector<1x1x128xf32> to vector<16x16x128xf32>
    %44 = arith.mulf %39, %43 : vector<16x16x128xf32>
    %45 = arith.addf %38, %44 : vector<16x16x128xf32>
    %c1_37 = arith.constant 1 : index
    %c0_38 = arith.constant 0 : index
    %c0_39 = arith.constant 0 : index
    %46 = vector.load %arg9[%c1_37, %c0_38, %c0_39] : memref<18x18x128xf32, #tpu.memory_space<vmem>>, vector<16x16x128xf32>
    %47 = vector.extract_strided_slice %20 {offsets = [1, 0, 0], sizes = [1, 1, 128], strides = [1, 1, 1]} : vector<3x3x128xf32> to vector<1x1x128xf32>
    %48 = vector.shape_cast %47 : vector<1x1x128xf32> to vector<128xf32>
    %49 = vector.shape_cast %48 : vector<128xf32> to vector<1x1x128xf32>
    %50 = vector.broadcast %49 : vector<1x1x128xf32> to vector<16x16x128xf32>
    %51 = arith.mulf %46, %50 : vector<16x16x128xf32>
    %52 = arith.addf %45, %51 : vector<16x16x128xf32>
    %c1_40 = arith.constant 1 : index
    %c1_41 = arith.constant 1 : index
    %c0_42 = arith.constant 0 : index
    %53 = vector.load %arg9[%c1_40, %c1_41, %c0_42] : memref<18x18x128xf32, #tpu.memory_space<vmem>>, vector<16x16x128xf32>
    %54 = vector.extract_strided_slice %20 {offsets = [1, 1, 0], sizes = [1, 1, 128], strides = [1, 1, 1]} : vector<3x3x128xf32> to vector<1x1x128xf32>
    %55 = vector.shape_cast %54 : vector<1x1x128xf32> to vector<128xf32>
    %56 = vector.shape_cast %55 : vector<128xf32> to vector<1x1x128xf32>
    %57 = vector.broadcast %56 : vector<1x1x128xf32> to vector<16x16x128xf32>
    %58 = arith.mulf %53, %57 : vector<16x16x128xf32>
    %59 = arith.addf %52, %58 : vector<16x16x128xf32>
    %c1_43 = arith.constant 1 : index
    %c2_44 = arith.constant 2 : index
    %c0_45 = arith.constant 0 : index
    %60 = vector.load %arg9[%c1_43, %c2_44, %c0_45] : memref<18x18x128xf32, #tpu.memory_space<vmem>>, vector<16x16x128xf32>
    %61 = vector.extract_strided_slice %20 {offsets = [1, 2, 0], sizes = [1, 1, 128], strides = [1, 1, 1]} : vector<3x3x128xf32> to vector<1x1x128xf32>
    %62 = vector.shape_cast %61 : vector<1x1x128xf32> to vector<128xf32>
    %63 = vector.shape_cast %62 : vector<128xf32> to vector<1x1x128xf32>
    %64 = vector.broadcast %63 : vector<1x1x128xf32> to vector<16x16x128xf32>
    %65 = arith.mulf %60, %64 : vector<16x16x128xf32>
    %66 = arith.addf %59, %65 : vector<16x16x128xf32>
    %c2_46 = arith.constant 2 : index
    %c0_47 = arith.constant 0 : index
    %c0_48 = arith.constant 0 : index
    %67 = vector.load %arg9[%c2_46, %c0_47, %c0_48] : memref<18x18x128xf32, #tpu.memory_space<vmem>>, vector<16x16x128xf32>
    %68 = vector.extract_strided_slice %20 {offsets = [2, 0, 0], sizes = [1, 1, 128], strides = [1, 1, 1]} : vector<3x3x128xf32> to vector<1x1x128xf32>
    %69 = vector.shape_cast %68 : vector<1x1x128xf32> to vector<128xf32>
    %70 = vector.shape_cast %69 : vector<128xf32> to vector<1x1x128xf32>
    %71 = vector.broadcast %70 : vector<1x1x128xf32> to vector<16x16x128xf32>
    %72 = arith.mulf %67, %71 : vector<16x16x128xf32>
    %73 = arith.addf %66, %72 : vector<16x16x128xf32>
    %c2_49 = arith.constant 2 : index
    %c1_50 = arith.constant 1 : index
    %c0_51 = arith.constant 0 : index
    %74 = vector.load %arg9[%c2_49, %c1_50, %c0_51] : memref<18x18x128xf32, #tpu.memory_space<vmem>>, vector<16x16x128xf32>
    %75 = vector.extract_strided_slice %20 {offsets = [2, 1, 0], sizes = [1, 1, 128], strides = [1, 1, 1]} : vector<3x3x128xf32> to vector<1x1x128xf32>
    %76 = vector.shape_cast %75 : vector<1x1x128xf32> to vector<128xf32>
    %77 = vector.shape_cast %76 : vector<128xf32> to vector<1x1x128xf32>
    %78 = vector.broadcast %77 : vector<1x1x128xf32> to vector<16x16x128xf32>
    %79 = arith.mulf %74, %78 : vector<16x16x128xf32>
    %80 = arith.addf %73, %79 : vector<16x16x128xf32>
    %c2_52 = arith.constant 2 : index
    %c2_53 = arith.constant 2 : index
    %c0_54 = arith.constant 0 : index
    %81 = vector.load %arg9[%c2_52, %c2_53, %c0_54] : memref<18x18x128xf32, #tpu.memory_space<vmem>>, vector<16x16x128xf32>
    %82 = vector.extract_strided_slice %20 {offsets = [2, 2, 0], sizes = [1, 1, 128], strides = [1, 1, 1]} : vector<3x3x128xf32> to vector<1x1x128xf32>
    %83 = vector.shape_cast %82 : vector<1x1x128xf32> to vector<128xf32>
    %84 = vector.shape_cast %83 : vector<128xf32> to vector<1x1x128xf32>
    %85 = vector.broadcast %84 : vector<1x1x128xf32> to vector<16x16x128xf32>
    %86 = arith.mulf %81, %85 : vector<16x16x128xf32>
    %87 = arith.addf %80, %86 : vector<16x16x128xf32>
    %cst_55 = arith.constant 0.000000e+00 : f32
    %cst_56 = arith.constant 6.000000e+00 : f32
    %88 = vector.broadcast %cst_55 : f32 to vector<16x16x128xf32>
    %89 = arith.maximumf %88, %87 : vector<16x16x128xf32>
    %90 = vector.broadcast %cst_56 : f32 to vector<16x16x128xf32>
    %91 = arith.minimumf %90, %89 : vector<16x16x128xf32>
    %92 = arith.truncf %91 : vector<16x16x128xf32> to vector<16x16x128xbf16>
    %93 = vector.shape_cast %92 : vector<16x16x128xbf16> to vector<256x128xbf16>
    %c0_57 = arith.constant 0 : index
    %c0_58 = arith.constant 0 : index
    %94 = vector.load %arg6[%c0_57, %c0_58] : memref<128x128xbf16, #tpu.memory_space<vmem>>, vector<128x128xbf16>
    %cst_59 = arith.constant dense<0.000000e+00> : vector<256x128xf32>
    %95 = tpu.matmul %93, %94, %cst_59 {dimension_numbers = #tpu.dot_dimension_numbers<[1], [0], [0], [1], [0, 0, 1, 1], [], []>} : vector<256x128xbf16>, vector<128x128xbf16>, vector<256x128xf32> -> vector<256x128xf32>
    %c0_60 = arith.constant 0 : index
    %c0_61 = arith.constant 0 : index
    %96 = vector.load %arg7[%c0_60, %c0_61] : memref<1x128xf32, #tpu.memory_space<vmem>>, vector<1x128xf32>
    %97 = vector.broadcast %96 : vector<1x128xf32> to vector<256x128xf32>
    %98 = arith.addf %95, %97 : vector<256x128xf32>
    %99 = vector.shape_cast %1 : vector<16x16x128xbf16> to vector<256x128xbf16>
    %100 = arith.extf %99 : vector<256x128xbf16> to vector<256x128xf32>
    %101 = arith.addf %98, %100 : vector<256x128xf32>
    %102 = vector.shape_cast %101 : vector<256x128xf32> to vector<16x16x128xf32>
    %103 = arith.truncf %102 : vector<16x16x128xf32> to vector<16x16x128xbf16>
    %c0_62 = arith.constant 0 : index
    %c0_63 = arith.constant 0 : index
    %c0_64 = arith.constant 0 : index
    %c0_65 = arith.constant 0 : index
    %104 = vector.load %arg8[%c0_62, %c0_63, %c0_64, %c0_65] : memref<1x16x16x128xbf16, #tpu.memory_space<vmem>>, vector<1x16x16x128xbf16>
    %105 = vector.shape_cast %104 : vector<1x16x16x128xbf16> to vector<16x16x128xbf16>
    %106 = vector.shape_cast %103 : vector<16x16x128xbf16> to vector<1x16x16x128xbf16>
    tpu.vector_store %arg8[%c0_62, %c0_63, %c0_64, %c0_65], %106 {strides = array<i32>} : memref<1x16x16x128xbf16, #tpu.memory_space<vmem>>, vector<1x16x16x128xbf16>,
    return
  }
  func.func @transform_0(%arg0: i32) -> (i32, i32, i32, i32) {
    %c0_i32 = arith.constant 0 : i32
    %c0_i32_0 = arith.constant 0 : i32
    %c0_i32_1 = arith.constant 0 : i32
    %c0_i32_2 = arith.constant 0 : i32
    return %arg0, %c0_i32, %c0_i32_0, %c0_i32_1 : i32, i32, i32, i32
  }
  func.func @transform_1(%arg0: i32) -> (i32, i32) {
    %c0_i32 = arith.constant 0 : i32
    %c0_i32_0 = arith.constant 0 : i32
    %c0_i32_1 = arith.constant 0 : i32
    return %c0_i32, %c0_i32_0 : i32, i32
  }
  func.func @transform_2(%arg0: i32) -> (i32, i32) {
    %c0_i32 = arith.constant 0 : i32
    %c0_i32_0 = arith.constant 0 : i32
    %c0_i32_1 = arith.constant 0 : i32
    return %c0_i32, %c0_i32_0 : i32, i32
  }
  func.func @transform_3(%arg0: i32) -> (i32, i32, i32) {
    %c0_i32 = arith.constant 0 : i32
    %c0_i32_0 = arith.constant 0 : i32
    %c0_i32_1 = arith.constant 0 : i32
    %c0_i32_2 = arith.constant 0 : i32
    return %c0_i32, %c0_i32_0, %c0_i32_1 : i32, i32, i32
  }
  func.func @transform_4(%arg0: i32) -> (i32, i32) {
    %c0_i32 = arith.constant 0 : i32
    %c0_i32_0 = arith.constant 0 : i32
    %c0_i32_1 = arith.constant 0 : i32
    return %c0_i32, %c0_i32_0 : i32, i32
  }
  func.func @transform_5(%arg0: i32) -> (i32, i32) {
    %c0_i32 = arith.constant 0 : i32
    %c0_i32_0 = arith.constant 0 : i32
    %c0_i32_1 = arith.constant 0 : i32
    return %c0_i32, %c0_i32_0 : i32, i32
  }
  func.func @transform_6(%arg0: i32) -> (i32, i32) {
    %c0_i32 = arith.constant 0 : i32
    %c0_i32_0 = arith.constant 0 : i32
    %c0_i32_1 = arith.constant 0 : i32
    return %c0_i32, %c0_i32_0 : i32, i32
  }
  func.func @transform_7(%arg0: i32) -> (i32, i32, i32, i32) {
    %c0_i32 = arith.constant 0 : i32
    %c0_i32_0 = arith.constant 0 : i32
    %c0_i32_1 = arith.constant 0 : i32
    %c0_i32_2 = arith.constant 0 : i32
    return %arg0, %c0_i32, %c0_i32_0, %c0_i32_1 : i32, i32, i32, i32
  }
}

</mosaic_0001>

<llo_original>
// kernel: inverted_residual_forward.1
$region0: #{inverted_residual_forward.1}
  #allocation0 [shape = 'u32[]', space=smem, size = 0x4, offset = 0x4, fixed_abs, tag = 'smem constant byte address 0x4 - core index']
  #allocation1 [shape = 'u32[144,128]{1,0:T(1,128)}', space=vmem, size = 0x12000, scoped, tag = 'internal scratch']
  #allocation2 [shape = 'f32[18,18,128]{2,1,0:T(8,128)}', space=vmem, size = 0x36000, scoped, tag = 'scratch operand']
  %s0 = inlined_call_operand.vmem [shape: bf16[2,16,16,128], index: 0, kind: input, shape index: {}]
  %s1 = inlined_call_operand.vmem [shape: bf16[128,128], index: 1, kind: input, shape index: {}]
  %s2 = inlined_call_operand.vmem [shape: f32[1,128], index: 2, kind: input, shape index: {}]
  %s3 = inlined_call_operand.vmem [shape: f32[3,3,128], index: 3, kind: input, shape index: {}]
  %s4 = inlined_call_operand.vmem [shape: f32[1,128], index: 4, kind: input, shape index: {}]
  %s5 = inlined_call_operand.vmem [shape: bf16[128,128], index: 5, kind: input, shape index: {}]
  %s6 = inlined_call_operand.vmem [shape: f32[1,128], index: 6, kind: input, shape index: {}]
  %s7 = inlined_call_operand.vmem [shape: bf16[2,16,16,128], index: 7, kind: output, shape index: {}]
  %s8 = sld [smem:[#allocation0]]
  $region61: #{inverted_residual_forward.1} parent=0
    _
  %s10 = ssub.s32 1, %s8
  %s11 = scalar_select 0, %s10, %s8
  loop: start=0, step=1, limit=4
  $region2: #{inverted_residual_forward.1} parent=0 // loop_pre_header
    _
  $region3: #{inverted_residual_forward.1} parent=0 // loop_header
    %s13 = sphi 0, %s17
    %p14 = scmp.ge.s32.totalorder %s13, 4
    %s23 = sphi 0, %s25
    %s26 = sphi 0, %s23
    %s27 = sphi 0, %s26
    %s43 = sphi 0, %s27
    %s47 = sphi 0, %s47
    %s49 = sphi 0, %s47
    %s50 = sphi 0, %s49
    %s64 = sphi 0, %s50
    %s68 = sphi 0, %s68
    %s70 = sphi 0, %s68
    %s71 = sphi 0, %s70
    %s85 = sphi 0, %s71
    %s89 = sphi 0, %s89
    %s91 = sphi 0, %s89
    %s92 = sphi 0, %s91
    %s106 = sphi 0, %s92
    %s110 = sphi 0, %s110
    %s112 = sphi 0, %s110
    %s113 = sphi 0, %s112
    %s127 = sphi 0, %s113
    %s131 = sphi 0, %s131
    %s133 = sphi 0, %s131
    %s134 = sphi 0, %s133
    %s148 = sphi 0, %s134
    %s152 = sphi 0, %s152
    %s154 = sphi 0, %s152
    %s155 = sphi 0, %s154
    %s169 = sphi 0, %s155
    %s175 = sphi 0, %s177
    %s178 = sphi 0, %s175
    %s179 = sphi 0, %s178
    %s195 = sphi 0, %s179
  $region4: #{inverted_residual_forward.1} parent=0 // loop_header_branch
    %16 = sbr.rel (%p14) target = $region8
  $region5: #{inverted_residual_forward.1} parent=0 // loop_body
    %s18 = ssub.s32 %s13, 1
    %s19 = ssub.s32 %s13, 2
    %s20 = sadd.s32 %s13, 1
    %s21 = ssub.s32 %s13, %s20
    %p22 = scmp.eq.s32.totalorder %s21, 0
    %s24 = sadd.s32 %s23, 1
    %s25 = scalar_select %p22, %s23, %s24
    %p28 = pneg %p22
    %p29 = scmp.eq.s32.totalorder %s13, 1
    %p30 = por %p28, %p29
    %p31 = scmp.ne.s32.totalorder %s23, %s26
    %p32 = scmp.eq.s32.totalorder %s13, 0
    %p33 = por %p31, %p32
    %p34 = scmp.ne.s32.totalorder %s23, %s26
    %p35 = scmp.eq.s32.totalorder %s18, 1
    %p36 = por %p34, %p35
    %p37 = scmp.ne.s32.totalorder %s26, %s27
    %p38 = scmp.eq.s32.totalorder %s18, 0
    %p39 = por %p37, %p38
    %p40 = scmp.ne.s32.totalorder %s26, %s27
    %p41 = scmp.eq.s32.totalorder %s19, 1
    %p42 = por %p40, %p41
    %p44 = scmp.ne.s32.totalorder %s27, %s43
    %p45 = scmp.eq.s32.totalorder %s19, 0
    %p46 = por %p44, %p45
    %s48 = sadd.s32 %s47, 1
    %p51 = scmp.eq.s32.totalorder %s13, 1
    %p52 = scmp.ne.s32.totalorder %s47, %s49
    %p53 = scmp.eq.s32.totalorder %s13, 0
    %p54 = por %p52, %p53
    %p55 = scmp.ne.s32.totalorder %s47, %s49
    %p56 = scmp.eq.s32.totalorder %s18, 1
    %p57 = por %p55, %p56
    %p58 = scmp.ne.s32.totalorder %s49, %s50
    %p59 = scmp.eq.s32.totalorder %s18, 0
    %p60 = por %p58, %p59
    %p61 = scmp.ne.s32.totalorder %s49, %s50
    %p62 = scmp.eq.s32.totalorder %s19, 1
    %p63 = por %p61, %p62
    %p65 = scmp.ne.s32.totalorder %s50, %s64
    %p66 = scmp.eq.s32.totalorder %s19, 0
    %p67 = por %p65, %p66
    %s69 = sadd.s32 %s68, 1
    %p72 = scmp.eq.s32.totalorder %s13, 1
    %p73 = scmp.ne.s32.totalorder %s68, %s70
    %p74 = scmp.eq.s32.totalorder %s13, 0
    %p75 = por %p73, %p74
    %p76 = scmp.ne.s32.totalorder %s68, %s70
    %p77 = scmp.eq.s32.totalorder %s18, 1
    %p78 = por %p76, %p77
    %p79 = scmp.ne.s32.totalorder %s70, %s71
    %p80 = scmp.eq.s32.totalorder %s18, 0
    %p81 = por %p79, %p80
    %p82 = scmp.ne.s32.totalorder %s70, %s71
    %p83 = scmp.eq.s32.totalorder %s19, 1
    %p84 = por %p82, %p83
    %p86 = scmp.ne.s32.totalorder %s71, %s85
    %p87 = scmp.eq.s32.totalorder %s19, 0
    %p88 = por %p86, %p87
    %s90 = sadd.s32 %s89, 1
    %p93 = scmp.eq.s32.totalorder %s13, 1
    %p94 = scmp.ne.s32.totalorder %s89, %s91
    %p95 = scmp.eq.s32.totalorder %s13, 0
    %p96 = por %p94, %p95
    %p97 = scmp.ne.s32.totalorder %s89, %s91
    %p98 = scmp.eq.s32.totalorder %s18, 1
    %p99 = por %p97, %p98
    %p100 = scmp.ne.s32.totalorder %s91, %s92
    %p101 = scmp.eq.s32.totalorder %s18, 0
    %p102 = por %p100, %p101
    %p103 = scmp.ne.s32.totalorder %s91, %s92
    %p104 = scmp.eq.s32.totalorder %s19, 1
    %p105 = por %p103, %p104
    %p107 = scmp.ne.s32.totalorder %s92, %s106
    %p108 = scmp.eq.s32.totalorder %s19, 0
    %p109 = por %p107, %p108
    %s111 = sadd.s32 %s110, 1
    %p114 = scmp.eq.s32.totalorder %s13, 1
    %p115 = scmp.ne.s32.totalorder %s110, %s112
    %p116 = scmp.eq.s32.totalorder %s13, 0
    %p117 = por %p115, %p116
    %p118 = scmp.ne.s32.totalorder %s110, %s112
    %p119 = scmp.eq.s32.totalorder %s18, 1
    %p120 = por %p118, %p119
    %p121 = scmp.ne.s32.totalorder %s112, %s113
    %p122 = scmp.eq.s32.totalorder %s18, 0
    %p123 = por %p121, %p122
    %p124 = scmp.ne.s32.totalorder %s112, %s113
    %p125 = scmp.eq.s32.totalorder %s19, 1
    %p126 = por %p124, %p125
    %p128 = scmp.ne.s32.totalorder %s113, %s127
    %p129 = scmp.eq.s32.totalorder %s19, 0
    %p130 = por %p128, %p129
    %s132 = sadd.s32 %s131, 1
    %p135 = scmp.eq.s32.totalorder %s13, 1
    %p136 = scmp.ne.s32.totalorder %s131, %s133
    %p137 = scmp.eq.s32.totalorder %s13, 0
    %p138 = por %p136, %p137
    %p139 = scmp.ne.s32.totalorder %s131, %s133
    %p140 = scmp.eq.s32.totalorder %s18, 1
    %p141 = por %p139, %p140
    %p142 = scmp.ne.s32.totalorder %s133, %s134
    %p143 = scmp.eq.s32.totalorder %s18, 0
    %p144 = por %p142, %p143
    %p145 = scmp.ne.s32.totalorder %s133, %s134
    %p146 = scmp.eq.s32.totalorder %s19, 1
    %p147 = por %p145, %p146
    %p149 = scmp.ne.s32.totalorder %s134, %s148
    %p150 = scmp.eq.s32.totalorder %s19, 0
    %p151 = por %p149, %p150
    %s153 = sadd.s32 %s152, 1
    %p156 = scmp.eq.s32.totalorder %s13, 1
    %p157 = scmp.ne.s32.totalorder %s152, %s154
    %p158 = scmp.eq.s32.totalorder %s13, 0
    %p159 = por %p157, %p158
    %p160 = scmp.ne.s32.totalorder %s152, %s154
    %p161 = scmp.eq.s32.totalorder %s18, 1
    %p162 = por %p160, %p161
    %p163 = scmp.ne.s32.totalorder %s154, %s155
    %p164 = scmp.eq.s32.totalorder %s18, 0
    %p165 = por %p163, %p164
    %p166 = scmp.ne.s32.totalorder %s154, %s155
    %p167 = scmp.eq.s32.totalorder %s19, 1
    %p168 = por %p166, %p167
    %p170 = scmp.ne.s32.totalorder %s155, %s169
    %p171 = scmp.eq.s32.totalorder %s19, 0
    %p172 = por %p170, %p171
    %s173 = ssub.s32 %s13, %s20
    %p174 = scmp.eq.s32.totalorder %s173, 0
    %s176 = sadd.s32 %s175, 1
    %s177 = scalar_select %p174, %s175, %s176
    %p180 = pneg %p174
    %p181 = scmp.eq.s32.totalorder %s13, 1
    %p182 = por %p180, %p181
    %p183 = scmp.ne.s32.totalorder %s175, %s178
    %p184 = scmp.eq.s32.totalorder %s13, 0
    %p185 = por %p183, %p184
    %p186 = scmp.ne.s32.totalorder %s175, %s178
    %p187 = scmp.eq.s32.totalorder %s18, 1
    %p188 = por %p186, %p187
    %p189 = scmp.ne.s32.totalorder %s178, %s179
    %p190 = scmp.eq.s32.totalorder %s18, 0
    %p191 = por %p189, %p190
    %p192 = scmp.ne.s32.totalorder %s178, %s179
    %p193 = scmp.eq.s32.totalorder %s19, 1
    %p194 = por %p192, %p193
    %p196 = scmp.ne.s32.totalorder %s179, %s195
    %p197 = scmp.eq.s32.totalorder %s19, 0
    %p198 = por %p196, %p197
    %p199 = scmp.le.s32.totalorder 1, %s13
    %p200 = scmp.lt.s32.totalorder %s13, 3
    %p201 = pnand %p199, %p200
    %p202 = pneg %p201
    // Predicated region
    $region9: #{inverted_residual_forward.1} parent=5 // pred_check
      _
    $region10: #{inverted_residual_forward.1} parent=5 // pred_check_branch
      %204 = sbr.rel (%p201) target = $region12
    $region11: #{inverted_residual_forward.1} parent=5 // pred_region
      %s205 = ssub.s32 %s13, 1
      // Predicated region
      $region13: #{inverted_residual_forward.1} parent=11 // pred_check
        %p206 = pneg %p60
      $region14: #{inverted_residual_forward.1} parent=11 // pred_check_branch
        %208 = sbr.rel (%p206) target = $region16
      $region15: #{inverted_residual_forward.1} parent=11 // pred_region
        _
      $region16: #{inverted_residual_forward.1} parent=11 // pred_fallthru
        _
      // Predicated region
      $region17: #{inverted_residual_forward.1} parent=11 // pred_check
        %p209 = pneg %p81
      $region18: #{inverted_residual_forward.1} parent=11 // pred_check_branch
        %211 = sbr.rel (%p209) target = $region20
      $region19: #{inverted_residual_forward.1} parent=11 // pred_region
        _
      $region20: #{inverted_residual_forward.1} parent=11 // pred_fallthru
        _
      // Predicated region
      $region21: #{inverted_residual_forward.1} parent=11 // pred_check
        %p212 = pneg %p102
      $region22: #{inverted_residual_forward.1} parent=11 // pred_check_branch
        %214 = sbr.rel (%p212) target = $region24
      $region23: #{inverted_residual_forward.1} parent=11 // pred_region
        _
      $region24: #{inverted_residual_forward.1} parent=11 // pred_fallthru
        _
      // Predicated region
      $region25: #{inverted_residual_forward.1} parent=11 // pred_check
        %p215 = pneg %p123
      $region26: #{inverted_residual_forward.1} parent=11 // pred_check_branch
        %217 = sbr.rel (%p215) target = $region28
      $region27: #{inverted_residual_forward.1} parent=11 // pred_region
        _
      $region28: #{inverted_residual_forward.1} parent=11 // pred_fallthru
        _
      // Predicated region
      $region29: #{inverted_residual_forward.1} parent=11 // pred_check
        %p218 = pneg %p144
      $region30: #{inverted_residual_forward.1} parent=11 // pred_check_branch
        %220 = sbr.rel (%p218) target = $region32
      $region31: #{inverted_residual_forward.1} parent=11 // pred_region
        _
      $region32: #{inverted_residual_forward.1} parent=11 // pred_fallthru
        _
      // Predicated region
      $region33: #{inverted_residual_forward.1} parent=11 // pred_check
        %p221 = pneg %p165
      $region34: #{inverted_residual_forward.1} parent=11 // pred_check_branch
        %223 = sbr.rel (%p221) target = $region36
      $region35: #{inverted_residual_forward.1} parent=11 // pred_region
        _
      $region36: #{inverted_residual_forward.1} parent=11 // pred_fallthru
        _
    $region12: #{inverted_residual_forward.1} parent=5 // pred_fallthru
      _
    %p224 = scmp.lt.s32.totalorder %s13, 2
    // Predicated region
    $region37: #{inverted_residual_forward.1} parent=5 // pred_check
      %p225 = pneg %p224
    $region38: #{inverted_residual_forward.1} parent=5 // pred_check_branch
      %227 = sbr.rel (%p225) target = $region40
    $region39: #{inverted_residual_forward.1} parent=5 // pred_region
      // Predicated region
      $region41: #{inverted_residual_forward.1} parent=39 // pred_check
        %p228 = pneg %p33
      $region42: #{inverted_residual_forward.1} parent=39 // pred_check_branch
        %230 = sbr.rel (%p228) target = $region44
      $region43: #{inverted_residual_forward.1} parent=39 // pred_region
        %p231 = scmp.lt.s32.totalorder %s13, 1
        %s232 = scalar_select %p231, %s13, 1
        %s233 = smul.addr %s232, 32
        %s234 = smul.addr %s233, 4
        %s235 = scalar_lea.vmem %s0, %s234
      $region44: #{inverted_residual_forward.1} parent=39 // pred_fallthru
        _
    $region40: #{inverted_residual_forward.1} parent=5 // pred_fallthru
      _
    %p236 = scmp.le.s32.totalorder 1, %s13
    %p237 = scmp.lt.s32.totalorder %s13, 3
    %p238 = pnand %p236, %p237
    %p239 = pneg %p238
    // Predicated region
    $region45: #{inverted_residual_forward.1} parent=5 // pred_check
      _
    $region46: #{inverted_residual_forward.1} parent=5 // pred_check_branch
      %241 = sbr.rel (%p238) target = $region48
    $region47: #{inverted_residual_forward.1} parent=5 // pred_region
      %s242 = ssub.s32 %s13, 1
      %p243 = scmp.lt.s32.totalorder %s18, 1
      %s244 = scalar_select %p243, %s18, 1
      %s245 = smul.addr %s244, 32
      %s246 = smul.addr %s245, 4
      %s247 = scalar_lea.vmem %s0, %s246
      %p248 = pneg %p39
      %p249 = pneg %p36
      %p250 = pneg %p60
      %p251 = pneg %p57
      %p252 = pneg %p81
      %p253 = pneg %p78
      %p254 = pneg %p102
      %p255 = pneg %p99
      %p256 = pneg %p123
      %p257 = pneg %p120
      %p258 = pneg %p144
      %p259 = pneg %p141
      %p260 = pneg %p165
      %p261 = pneg %p162
      %p262 = pneg %p191
      %p263 = pneg %p188
      %p264 = scmp.lt.s32.totalorder %s18, 1
      %s265 = scalar_select %p264, %s18, 1
      %s266 = smul.addr %s265, 32
      %s267 = smul.addr %s266, 4
      %s268 = scalar_lea.vmem %s7, %s267
      %p269 = scmp.lt.s32.totalorder %s18, 1
      %s270 = scalar_select %p269, %s18, 1
      %s271 = smul.addr %s270, 32
      %s272 = smul.addr %s271, 4
      %s273 = scalar_lea.vmem %s0, %s272
      %p274 = scmp.lt.s32.totalorder %s18, 1
      %s275 = scalar_select %p274, %s18, 1
      %s276 = smul.addr %s275, 32
      %s277 = smul.addr %s276, 4
      %s278 = scalar_lea.vmem %s7, %s277
      %v280 = vld [vmem:[%s273] sm:$0xf]
      %v281 = vld [vmem:[%s273 + $0x4] sm:$0xf]
      %v282 = vld [vmem:[%s273 + $0x8] sm:$0xf]
      %v283 = vld [vmem:[%s273 + $0xc] sm:$0xf]
      %v284 = vld [vmem:[%s273 + $0x10] sm:$0xf]
      %v285 = vld [vmem:[%s273 + $0x14] sm:$0xf]
      %v286 = vld [vmem:[%s273 + $0x18] sm:$0xf]
      %v287 = vld [vmem:[%s273 + $0x1c] sm:$0xf]
      %v288 = vld [vmem:[%s273 + $0x20] sm:$0xf]
      %v289 = vld [vmem:[%s273 + $0x24] sm:$0xf]
      %v290 = vld [vmem:[%s273 + $0x28] sm:$0xf]
      %v291 = vld [vmem:[%s273 + $0x2c] sm:$0xf]
      %v292 = vld [vmem:[%s273 + $0x30] sm:$0xf]
      %v293 = vld [vmem:[%s273 + $0x34] sm:$0xf]
      %v294 = vld [vmem:[%s273 + $0x38] sm:$0xf]
      %v295 = vld [vmem:[%s273 + $0x3c] sm:$0xf]
      %v296 = vld [vmem:[%s273 + $0x40] sm:$0xf]
      %v297 = vld [vmem:[%s273 + $0x44] sm:$0xf]
      %v298 = vld [vmem:[%s273 + $0x48] sm:$0xf]
      %v299 = vld [vmem:[%s273 + $0x4c] sm:$0xf]
      %v300 = vld [vmem:[%s273 + $0x50] sm:$0xf]
      %v301 = vld [vmem:[%s273 + $0x54] sm:$0xf]
      %v302 = vld [vmem:[%s273 + $0x58] sm:$0xf]
      %v303 = vld [vmem:[%s273 + $0x5c] sm:$0xf]
      %v304 = vld [vmem:[%s273 + $0x60] sm:$0xf]
      %v305 = vld [vmem:[%s273 + $0x64] sm:$0xf]
      %v306 = vld [vmem:[%s273 + $0x68] sm:$0xf]
      %v307 = vld [vmem:[%s273 + $0x6c] sm:$0xf]
      %v308 = vld [vmem:[%s273 + $0x70] sm:$0xf]
      %v309 = vld [vmem:[%s273 + $0x74] sm:$0xf]
      %v310 = vld [vmem:[%s273 + $0x78] sm:$0xf]
      %v311 = vld [vmem:[%s273 + $0x7c] sm:$0xf]
      %v312 = vld [vmem:[%s1] sm:$0xf]
      %v313 = vld [vmem:[%s1 + $0x4] sm:$0xf]
      %v314 = vld [vmem:[%s1 + $0x8] sm:$0xf]
      %v315 = vld [vmem:[%s1 + $0xc] sm:$0xf]
      %v316 = vld [vmem:[%s1 + $0x10] sm:$0xf]
      %v317 = vld [vmem:[%s1 + $0x14] sm:$0xf]
      %v318 = vld [vmem:[%s1 + $0x18] sm:$0xf]
      %v319 = vld [vmem:[%s1 + $0x1c] sm:$0xf]
      %v320 = vld [vmem:[%s1 + $0x20] sm:$0xf]
      %v321 = vld [vmem:[%s1 + $0x24] sm:$0xf]
      %v322 = vld [vmem:[%s1 + $0x28] sm:$0xf]
      %v323 = vld [vmem:[%s1 + $0x2c] sm:$0xf]
      %v324 = vld [vmem:[%s1 + $0x30] sm:$0xf]
      %v325 = vld [vmem:[%s1 + $0x34] sm:$0xf]
      %v326 = vld [vmem:[%s1 + $0x38] sm:$0xf]
      %v327 = vld [vmem:[%s1 + $0x3c] sm:$0xf]
      %v328 = vld [vmem:[%s2] sm:$0x1]
      %v330 = vlaneseq
      %v331 = vshrl.u32 %v330, 7
      %v332 = vsub.s32 0, %v331
      %v333 = vrot.slane %v328, %v332
      %v367 = vunpack.c.l.b16 %v280
      %v368 = vunpack.c.l.b16 %v281
      %v369 = vunpack.c.l.b16 %v282
      %v370 = vunpack.c.l.b16 %v283
      %v371 = vunpack.c.l.b16 %v284
      %v372 = vunpack.c.l.b16 %v285
      %v373 = vunpack.c.l.b16 %v286
      %v374 = vunpack.c.l.b16 %v287
      %v375 = vunpack.c.l.b16 %v288
      %v376 = vunpack.c.l.b16 %v289
      %v377 = vunpack.c.l.b16 %v290
      %v378 = vunpack.c.l.b16 %v291
      %v379 = vunpack.c.l.b16 %v292
      %v380 = vunpack.c.l.b16 %v293
      %v381 = vunpack.c.l.b16 %v294
      %v382 = vunpack.c.l.b16 %v295
      %v383 = vunpack.c.l.b16 %v296
      %v384 = vunpack.c.l.b16 %v297
      %v385 = vunpack.c.l.b16 %v298
      %v386 = vunpack.c.l.b16 %v299
      %v387 = vunpack.c.l.b16 %v300
      %v388 = vunpack.c.l.b16 %v301
      %v389 = vunpack.c.l.b16 %v302
      %v390 = vunpack.c.l.b16 %v303
      %v391 = vunpack.c.l.b16 %v304
      %v392 = vunpack.c.l.b16 %v305
      %v393 = vunpack.c.l.b16 %v306
      %v394 = vunpack.c.l.b16 %v307
      %v395 = vunpack.c.l.b16 %v308
      %v396 = vunpack.c.l.b16 %v309
      %v397 = vunpack.c.l.b16 %v310
      %v398 = vunpack.c.l.b16 %v311
      %v399 = vpack.c.b16 %v368, %v367
      %v400 = vpack.c.b16 %v370, %v369
      %v401 = vpack.c.b16 %v372, %v371
      %v402 = vpack.c.b16 %v374, %v373
      %v403 = vpack.c.b16 %v376, %v375
      %v404 = vpack.c.b16 %v378, %v377
      %v405 = vpack.c.b16 %v380, %v379
      %v406 = vpack.c.b16 %v382, %v381
      %v407 = vpack.c.b16 %v384, %v383
      %v408 = vpack.c.b16 %v386, %v385
      %v409 = vpack.c.b16 %v388, %v387
      %v410 = vpack.c.b16 %v390, %v389
      %v411 = vpack.c.b16 %v392, %v391
      %v412 = vpack.c.b16 %v394, %v393
      %v413 = vpack.c.b16 %v396, %v395
      %v414 = vpack.c.b16 %v398, %v397
      %v447 = vunpack.c.l.b16 %v312
      %v448 = vunpack.c.l.b16 %v313
      %v449 = vunpack.c.l.b16 %v314
      %v450 = vunpack.c.l.b16 %v315
      %v451 = vunpack.c.l.b16 %v316
      %v452 = vunpack.c.l.b16 %v317
      %v453 = vunpack.c.l.b16 %v318
      %v454 = vunpack.c.l.b16 %v319
      %v455 = vunpack.c.l.b16 %v320
      %v456 = vunpack.c.l.b16 %v321
      %v457 = vunpack.c.l.b16 %v322
      %v458 = vunpack.c.l.b16 %v323
      %v459 = vunpack.c.l.b16 %v324
      %v460 = vunpack.c.l.b16 %v325
      %v461 = vunpack.c.l.b16 %v326
      %v462 = vunpack.c.l.b16 %v327
      %v463 = vpack.c.b16 %v448, %v447
      %v464 = vpack.c.b16 %v450, %v449
      %v465 = vpack.c.b16 %v452, %v451
      %v466 = vpack.c.b16 %v454, %v453
      %v467 = vpack.c.b16 %v456, %v455
      %v468 = vpack.c.b16 %v458, %v457
      %v469 = vpack.c.b16 %v460, %v459
      %v470 = vpack.c.b16 %v462, %v461
      %479 = vmatprep.subr.bf16.mxu0 0
      %480 = vmatpush1.bf16.msra.mxu0 %v463
      %481 = vmatprep.subr.bf16.mxu0 0
      %482 = vmatpush1.bf16.msra.mxu0 %v464
      %483 = vmatprep.subr.bf16.mxu0 0
      %484 = vmatpush1.bf16.msra.mxu0 %v465
      %485 = vmatprep.subr.bf16.mxu0 0
      %486 = vmatpush1.bf16.msra.mxu0 %v466
      %487 = vmatprep.subr.bf16.mxu0 0
      %488 = vmatpush1.bf16.msra.mxu0 %v467
      %489 = vmatprep.subr.bf16.mxu0 0
      %490 = vmatpush1.bf16.msra.mxu0 %v468
      %491 = vmatprep.subr.bf16.mxu0 0
      %492 = vmatpush1.bf16.msra.mxu0 %v469
      %493 = vmatprep.subr.bf16.mxu0 0
      %494 = vmatpush1.bf16.msra.mxu0 %v470
      %495 = vmatprep.subr.bf16.mxu0 0
      %496 = vmatpush1.bf16.msra.mxu0 0
      %497 = vmatprep.subr.bf16.mxu0 0
      %498 = vmatpush1.bf16.msra.mxu0 0
      %499 = vmatprep.subr.bf16.mxu0 0
      %500 = vmatpush1.bf16.msra.mxu0 0
      %501 = vmatprep.subr.bf16.mxu0 0
      %502 = vmatpush1.bf16.msra.mxu0 0
      %503 = vmatprep.subr.bf16.mxu0 0
      %504 = vmatpush1.bf16.msra.mxu0 0
      %505 = vmatprep.subr.bf16.mxu0 0
      %506 = vmatpush1.bf16.msra.mxu0 0
      %507 = vmatprep.subr.bf16.mxu0 0
      %508 = vmatpush1.bf16.msra.mxu0 0
      %509 = vmatprep.subr.bf16.mxu0 0
      %510 = vmatpush1.bf16.msra.mxu0 0
      %511 = vmatprep.mubr.bf16.mxu0 0
      %512 = vmatmul.mubr.bf16.gmra.mrb[0].mxu0 %v399
      %v513 = vpop.f32.mrb[0].mxu0
      %v514 = vadd.f32 %v333, %v513
      %v515 = vpop.f32.mrb[0].mxu0
      %v516 = vpop.f32.mrb[0].mxu0
      %v517 = vadd.f32 %v333, %v516
      %v518 = vpop.f32.mrb[0].mxu0
      %519 = vmatprep.mubr.bf16.mxu0 0
      %520 = vmatmul.mubr.bf16.gmra.mrb[0].mxu0 %v400
      %v521 = vpop.f32.mrb[0].mxu0
      %v522 = vadd.f32 %v333, %v521
      %v523 = vpop.f32.mrb[0].mxu0
      %v524 = vpop.f32.mrb[0].mxu0
      %v525 = vadd.f32 %v333, %v524
      %v526 = vpop.f32.mrb[0].mxu0
      %527 = vmatprep.mubr.bf16.mxu0 0
      %528 = vmatmul.mubr.bf16.gmra.mrb[0].mxu0 %v401
      %v529 = vpop.f32.mrb[0].mxu0
      %v530 = vadd.f32 %v333, %v529
      %v531 = vpop.f32.mrb[0].mxu0
      %v532 = vpop.f32.mrb[0].mxu0
      %v533 = vadd.f32 %v333, %v532
      %v534 = vpop.f32.mrb[0].mxu0
      %535 = vmatprep.mubr.bf16.mxu0 0
      %536 = vmatmul.mubr.bf16.gmra.mrb[0].mxu0 %v402
      %v537 = vpop.f32.mrb[0].mxu0
      %v538 = vadd.f32 %v333, %v537
      %v539 = vpop.f32.mrb[0].mxu0
      %v540 = vpop.f32.mrb[0].mxu0
      %v541 = vadd.f32 %v333, %v540
      %v542 = vpop.f32.mrb[0].mxu0
      %543 = vmatprep.mubr.bf16.mxu0 0
      %544 = vmatmul.mubr.bf16.gmra.mrb[0].mxu0 %v403
      %v545 = vpop.f32.mrb[0].mxu0
      %v546 = vadd.f32 %v333, %v545
      %v547 = vpop.f32.mrb[0].mxu0
      %v548 = vpop.f32.mrb[0].mxu0
      %v549 = vadd.f32 %v333, %v548
      %v550 = vpop.f32.mrb[0].mxu0
      %551 = vmatprep.mubr.bf16.mxu0 0
      %552 = vmatmul.mubr.bf16.gmra.mrb[0].mxu0 %v404
      %v553 = vpop.f32.mrb[0].mxu0
      %v554 = vadd.f32 %v333, %v553
      %v555 = vpop.f32.mrb[0].mxu0
      %v556 = vpop.f32.mrb[0].mxu0
      %v557 = vadd.f32 %v333, %v556
      %v558 = vpop.f32.mrb[0].mxu0
      %559 = vmatprep.mubr.bf16.mxu0 0
      %560 = vmatmul.mubr.bf16.gmra.mrb[0].mxu0 %v405
      %v561 = vpop.f32.mrb[0].mxu0
      %v562 = vadd.f32 %v333, %v561
      %v563 = vpop.f32.mrb[0].mxu0
      %v564 = vpop.f32.mrb[0].mxu0
      %v565 = vadd.f32 %v333, %v564
      %v566 = vpop.f32.mrb[0].mxu0
      %567 = vmatprep.mubr.bf16.mxu0 0
      %568 = vmatmul.mubr.bf16.gmra.mrb[0].mxu0 %v406
      %v569 = vpop.f32.mrb[0].mxu0
      %v570 = vadd.f32 %v333, %v569
      %v571 = vpop.f32.mrb[0].mxu0
      %v572 = vpop.f32.mrb[0].mxu0
      %v573 = vadd.f32 %v333, %v572
      %v574 = vpop.f32.mrb[0].mxu0
      %575 = vmatprep.mubr.bf16.mxu0 0
      %576 = vmatmul.mubr.bf16.gmra.mrb[0].mxu0 %v407
      %v577 = vpop.f32.mrb[0].mxu0
      %v578 = vadd.f32 %v333, %v577
      %v579 = vpop.f32.mrb[0].mxu0
      %v580 = vpop.f32.mrb[0].mxu0
      %v581 = vadd.f32 %v333, %v580
      %v582 = vpop.f32.mrb[0].mxu0
      %583 = vmatprep.mubr.bf16.mxu0 0
      %584 = vmatmul.mubr.bf16.gmra.mrb[0].mxu0 %v408
      %v585 = vpop.f32.mrb[0].mxu0
      %v586 = vadd.f32 %v333, %v585
      %v587 = vpop.f32.mrb[0].mxu0
      %v588 = vpop.f32.mrb[0].mxu0
      %v589 = vadd.f32 %v333, %v588
      %v590 = vpop.f32.mrb[0].mxu0
      %591 = vmatprep.mubr.bf16.mxu0 0
      %592 = vmatmul.mubr.bf16.gmra.mrb[0].mxu0 %v409
      %v593 = vpop.f32.mrb[0].mxu0
      %v594 = vadd.f32 %v333, %v593
      %v595 = vpop.f32.mrb[0].mxu0
      %v596 = vpop.f32.mrb[0].mxu0
      %v597 = vadd.f32 %v333, %v596
      %v598 = vpop.f32.mrb[0].mxu0
      %599 = vmatprep.mubr.bf16.mxu0 0
      %600 = vmatmul.mubr.bf16.gmra.mrb[0].mxu0 %v410
      %v601 = vpop.f32.mrb[0].mxu0
      %v602 = vadd.f32 %v333, %v601
      %v603 = vpop.f32.mrb[0].mxu0
      %v604 = vpop.f32.mrb[0].mxu0
      %v605 = vadd.f32 %v333, %v604
      %v606 = vpop.f32.mrb[0].mxu0
      %607 = vmatprep.mubr.bf16.mxu0 0
      %608 = vmatmul.mubr.bf16.gmra.mrb[0].mxu0 %v411
      %v609 = vpop.f32.mrb[0].mxu0
      %v610 = vadd.f32 %v333, %v609
      %v611 = vpop.f32.mrb[0].mxu0
      %v612 = vpop.f32.mrb[0].mxu0
      %v613 = vadd.f32 %v333, %v612
      %v614 = vpop.f32.mrb[0].mxu0
      %615 = vmatprep.mubr.bf16.mxu0 0
      %616 = vmatmul.mubr.bf16.gmra.mrb[0].mxu0 %v412
      %v617 = vpop.f32.mrb[0].mxu0
      %v618 = vadd.f32 %v333, %v617
      %v619 = vpop.f32.mrb[0].mxu0
      %v620 = vpop.f32.mrb[0].mxu0
      %v621 = vadd.f32 %v333, %v620
      %v622 = vpop.f32.mrb[0].mxu0
      %623 = vmatprep.mubr.bf16.mxu0 0
      %624 = vmatmul.mubr.bf16.gmra.mrb[0].mxu0 %v413
      %v625 = vpop.f32.mrb[0].mxu0
      %v626 = vadd.f32 %v333, %v625
      %v627 = vpop.f32.mrb[0].mxu0
      %v628 = vpop.f32.mrb[0].mxu0
      %v629 = vadd.f32 %v333, %v628
      %v630 = vpop.f32.mrb[0].mxu0
      %631 = vmatprep.mubr.bf16.mxu0 0
      %632 = vmatmul.mubr.bf16.gmra.mrb[0].mxu0 %v414
      %v633 = vpop.f32.mrb[0].mxu0
      %v634 = vadd.f32 %v333, %v633
      %v635 = vpop.f32.mrb[0].mxu0
      %v636 = vpop.f32.mrb[0].mxu0
      %v637 = vadd.f32 %v333, %v636
      %v638 = vpop.f32.mrb[0].mxu0
      %639 = vdwg.mxu0
      %v640 = vmax.f32 %v514, 0.0
      %v641 = vmax.f32 %v517, 0.0
      %v642 = vmax.f32 %v522, 0.0
      %v643 = vmax.f32 %v525, 0.0
      %v644 = vmax.f32 %v530, 0.0
      %v645 = vmax.f32 %v533, 0.0
      %v646 = vmax.f32 %v538, 0.0
      %v647 = vmax.f32 %v541, 0.0
      %v648 = vmax.f32 %v546, 0.0
      %v649 = vmax.f32 %v549, 0.0
      %v650 = vmax.f32 %v554, 0.0
      %v651 = vmax.f32 %v557, 0.0
      %v652 = vmax.f32 %v562, 0.0
      %v653 = vmax.f32 %v565, 0.0
      %v654 = vmax.f32 %v570, 0.0
      %v655 = vmax.f32 %v573, 0.0
      %v656 = vmax.f32 %v578, 0.0
      %v657 = vmax.f32 %v581, 0.0
      %v658 = vmax.f32 %v586, 0.0
      %v659 = vmax.f32 %v589, 0.0
      %v660 = vmax.f32 %v594, 0.0
      %v661 = vmax.f32 %v597, 0.0
      %v662 = vmax.f32 %v602, 0.0
      %v663 = vmax.f32 %v605, 0.0
      %v664 = vmax.f32 %v610, 0.0
      %v665 = vmax.f32 %v613, 0.0
      %v666 = vmax.f32 %v618, 0.0
      %v667 = vmax.f32 %v621, 0.0
      %v668 = vmax.f32 %v626, 0.0
      %v669 = vmax.f32 %v629, 0.0
      %v670 = vmax.f32 %v634, 0.0
      %v671 = vmax.f32 %v637, 0.0
      %v672 = vmin.f32 %v640, 6.0
      %v673 = vmin.f32 %v641, 6.0
      %v674 = vmin.f32 %v642, 6.0
      %v675 = vmin.f32 %v643, 6.0
      %v676 = vmin.f32 %v644, 6.0
      %v677 = vmin.f32 %v645, 6.0
      %v678 = vmin.f32 %v646, 6.0
      %v679 = vmin.f32 %v647, 6.0
      %v680 = vmin.f32 %v648, 6.0
      %v681 = vmin.f32 %v649, 6.0
      %v682 = vmin.f32 %v650, 6.0
      %v683 = vmin.f32 %v651, 6.0
      %v684 = vmin.f32 %v652, 6.0
      %v685 = vmin.f32 %v653, 6.0
      %v686 = vmin.f32 %v654, 6.0
      %v687 = vmin.f32 %v655, 6.0
      %v688 = vmin.f32 %v656, 6.0
      %v689 = vmin.f32 %v657, 6.0
      %v690 = vmin.f32 %v658, 6.0
      %v691 = vmin.f32 %v659, 6.0
      %v692 = vmin.f32 %v660, 6.0
      %v693 = vmin.f32 %v661, 6.0
      %v694 = vmin.f32 %v662, 6.0
      %v695 = vmin.f32 %v663, 6.0
      %v696 = vmin.f32 %v664, 6.0
      %v697 = vmin.f32 %v665, 6.0
      %v698 = vmin.f32 %v666, 6.0
      %v699 = vmin.f32 %v667, 6.0
      %v700 = vmin.f32 %v668, 6.0
      %v701 = vmin.f32 %v669, 6.0
      %v702 = vmin.f32 %v670, 6.0
      %v703 = vmin.f32 %v671, 6.0
      %s704 = scalar_lea.vmem [#allocation2], 24
      %705 = vst [vmem:[%s704 + $0x1] sm:$0xff] %v672
      %706 = vst [vmem:[%s704 + $0x9] sm:$0xff] %v673
      %707 = vst [vmem:[%s704 + $0x19] sm:$0xff] %v674
      %708 = vst [vmem:[%s704 + $0x21] sm:$0xff] %v675
      %709 = vst [vmem:[%s704 + $0x31] sm:$0xff] %v676
      %710 = vst [vmem:[%s704 + $0x39] sm:$0xff] %v677
      %711 = vst [vmem:[%s704 + $0x49] sm:$0xff] %v678
      %712 = vst [vmem:[%s704 + $0x51] sm:$0xff] %v679
      %713 = vst [vmem:[%s704 + $0x61] sm:$0xff] %v680
      %714 = vst [vmem:[%s704 + $0x69] sm:$0xff] %v681
      %715 = vst [vmem:[%s704 + $0x79] sm:$0xff] %v682
      %716 = vst [vmem:[%s704 + $0x81] sm:$0xff] %v683
      %717 = vst [vmem:[%s704 + $0x91] sm:$0xff] %v684
      %718 = vst [vmem:[%s704 + $0x99] sm:$0xff] %v685
      %719 = vst [vmem:[%s704 + $0xa9] sm:$0xff] %v686
      %720 = vst [vmem:[%s704 + $0xb1] sm:$0xff] %v687
      %721 = vst [vmem:[%s704 + $0xc1] sm:$0xff] %v688
      %722 = vst [vmem:[%s704 + $0xc9] sm:$0xff] %v689
      %723 = vst [vmem:[%s704 + $0xd9] sm:$0xff] %v690
      %724 = vst [vmem:[%s704 + $0xe1] sm:$0xff] %v691
      %725 = vst [vmem:[%s704 + $0xf1] sm:$0xff] %v692
      %726 = vst [vmem:[%s704 + $0xf9] sm:$0xff] %v693
      %727 = vst [vmem:[%s704 + $0x109] sm:$0xff] %v694
      %728 = vst [vmem:[%s704 + $0x111] sm:$0xff] %v695
      %729 = vst [vmem:[%s704 + $0x121] sm:$0xff] %v696
      %730 = vst [vmem:[%s704 + $0x129] sm:$0xff] %v697
      %731 = vst [vmem:[%s704 + $0x139] sm:$0xff] %v698
      %732 = vst [vmem:[%s704 + $0x141] sm:$0xff] %v699
      %733 = vst [vmem:[%s704 + $0x151] sm:$0xff] %v700
      %734 = vst [vmem:[%s704 + $0x159] sm:$0xff] %v701
      %735 = vst [vmem:[%s704 + $0x169] sm:$0xff] %v702
      %736 = vst [vmem:[%s704 + $0x171] sm:$0xff] %v703
      %737 = vst [vmem:[#allocation2] sm:$0xff] 0.0
      %738 = vst [vmem:[#allocation2 + $0x8] sm:$0xff] 0.0
      %739 = vst [vmem:[#allocation2 + $0x10] sm:$0x3] 0.0
      %s740 = scalar_lea.vmem [#allocation2], 408
      %741 = vst [vmem:[%s740] sm:$0xff] 0.0
      %742 = vst [vmem:[%s740 + $0x8] sm:$0xff] 0.0
      %743 = vst [vmem:[%s740 + $0x10] sm:$0x3] 0.0
      %744 = vst [vmem:[#allocation2] sm:$0x1] 0.0
      %745 = vst [vmem:[#allocation2 + $0x18] sm:$0x1] 0.0
      %746 = vst [vmem:[#allocation2 + $0x30] sm:$0x1] 0.0
      %747 = vst [vmem:[#allocation2 + $0x48] sm:$0x1] 0.0
      %748 = vst [vmem:[#allocation2 + $0x60] sm:$0x1] 0.0
      %749 = vst [vmem:[#allocation2 + $0x78] sm:$0x1] 0.0
      %750 = vst [vmem:[#allocation2 + $0x90] sm:$0x1] 0.0
      %751 = vst [vmem:[#allocation2 + $0xa8] sm:$0x1] 0.0
      %752 = vst [vmem:[#allocation2 + $0xc0] sm:$0x1] 0.0
      %753 = vst [vmem:[#allocation2 + $0xd8] sm:$0x1] 0.0
      %754 = vst [vmem:[#allocation2 + $0xf0] sm:$0x1] 0.0
      %755 = vst [vmem:[#allocation2 + $0x108] sm:$0x1] 0.0
      %756 = vst [vmem:[#allocation2 + $0x120] sm:$0x1] 0.0
      %757 = vst [vmem:[#allocation2 + $0x138] sm:$0x1] 0.0
      %758 = vst [vmem:[#allocation2 + $0x150] sm:$0x1] 0.0
      %759 = vst [vmem:[#allocation2 + $0x168] sm:$0x1] 0.0
      %760 = vst [vmem:[#allocation2 + $0x180] sm:$0x1] 0.0
      %761 = vst [vmem:[#allocation2 + $0x198] sm:$0x1] 0.0
      %762 = vst [vmem:[#allocation2 + $0x11] sm:$0x1] 0.0
      %763 = vst [vmem:[#allocation2 + $0x29] sm:$0x1] 0.0
      %764 = vst [vmem:[#allocation2 + $0x41] sm:$0x1] 0.0
      %765 = vst [vmem:[#allocation2 + $0x59] sm:$0x1] 0.0
      %766 = vst [vmem:[#allocation2 + $0x71] sm:$0x1] 0.0
      %767 = vst [vmem:[#allocation2 + $0x89] sm:$0x1] 0.0
      %768 = vst [vmem:[#allocation2 + $0xa1] sm:$0x1] 0.0
      %769 = vst [vmem:[#allocation2 + $0xb9] sm:$0x1] 0.0
      %770 = vst [vmem:[#allocation2 + $0xd1] sm:$0x1] 0.0
      %771 = vst [vmem:[#allocation2 + $0xe9] sm:$0x1] 0.0
      %772 = vst [vmem:[#allocation2 + $0x101] sm:$0x1] 0.0
      %773 = vst [vmem:[#allocation2 + $0x119] sm:$0x1] 0.0
      %774 = vst [vmem:[#allocation2 + $0x131] sm:$0x1] 0.0
      %775 = vst [vmem:[#allocation2 + $0x149] sm:$0x1] 0.0
      %776 = vst [vmem:[#allocation2 + $0x161] sm:$0x1] 0.0
      %777 = vst [vmem:[#allocation2 + $0x179] sm:$0x1] 0.0
      %778 = vst [vmem:[#allocation2 + $0x191] sm:$0x1] 0.0
      %779 = vst [vmem:[#allocation2 + $0x1a9] sm:$0x1] 0.0
      %v780 = vld [vmem:[%s3] sm:$0x7]
      %v781 = vld [vmem:[%s3 + $0x4] sm:$0x7]
      %v782 = vld [vmem:[%s3 + $0x8] sm:$0x7]
      %v783 = vld [vmem:[#allocation2] sm:$0xff]
      %v784 = vld [vmem:[#allocation2 + $0x8] sm:$0xff]
      %v785 = vld [vmem:[#allocation2 + $0x18] sm:$0xff]
      %v786 = vld [vmem:[#allocation2 + $0x20] sm:$0xff]
      %v787 = vld [vmem:[#allocation2 + $0x30] sm:$0xff]
      %v788 = vld [vmem:[#allocation2 + $0x38] sm:$0xff]
      %v789 = vld [vmem:[#allocation2 + $0x48] sm:$0xff]
      %v790 = vld [vmem:[#allocation2 + $0x50] sm:$0xff]
      %v791 = vld [vmem:[#allocation2 + $0x60] sm:$0xff]
      %v792 = vld [vmem:[#allocation2 + $0x68] sm:$0xff]
      %v793 = vld [vmem:[#allocation2 + $0x78] sm:$0xff]
      %v794 = vld [vmem:[#allocation2 + $0x80] sm:$0xff]
      %v795 = vld [vmem:[#allocation2 + $0x90] sm:$0xff]
      %v796 = vld [vmem:[#allocation2 + $0x98] sm:$0xff]
      %v797 = vld [vmem:[#allocation2 + $0xa8] sm:$0xff]
      %v798 = vld [vmem:[#allocation2 + $0xb0] sm:$0xff]
      %v799 = vld [vmem:[#allocation2 + $0xc0] sm:$0xff]
      %v800 = vld [vmem:[#allocation2 + $0xc8] sm:$0xff]
      %v801 = vld [vmem:[#allocation2 + $0xd8] sm:$0xff]
      %v802 = vld [vmem:[#allocation2 + $0xe0] sm:$0xff]
      %v803 = vld [vmem:[#allocation2 + $0xf0] sm:$0xff]
      %v804 = vld [vmem:[#allocation2 + $0xf8] sm:$0xff]
      %v805 = vld [vmem:[#allocation2 + $0x108] sm:$0xff]
      %v806 = vld [vmem:[#allocation2 + $0x110] sm:$0xff]
      %v807 = vld [vmem:[#allocation2 + $0x120] sm:$0xff]
      %v808 = vld [vmem:[#allocation2 + $0x128] sm:$0xff]
      %v809 = vld [vmem:[#allocation2 + $0x138] sm:$0xff]
      %v810 = vld [vmem:[#allocation2 + $0x140] sm:$0xff]
      %v811 = vld [vmem:[#allocation2 + $0x150] sm:$0xff]
      %v812 = vld [vmem:[#allocation2 + $0x158] sm:$0xff]
      %v813 = vld [vmem:[#allocation2 + $0x168] sm:$0xff]
      %v814 = vld [vmem:[#allocation2 + $0x170] sm:$0xff]
      %v815 = vlaneseq
      %v816 = vshrl.u32 %v815, 7
      %v817 = vsub.s32 0, %v816
      %v818 = vrot.slane %v780, %v817
      %v819 = vmul.f32 %v783, %v818
      %v820 = vmul.f32 %v784, %v818
      %v821 = vmul.f32 %v785, %v818
      %v822 = vmul.f32 %v786, %v818
      %v823 = vmul.f32 %v787, %v818
      %v824 = vmul.f32 %v788, %v818
      %v825 = vmul.f32 %v789, %v818
      %v826 = vmul.f32 %v790, %v818
      %v827 = vmul.f32 %v791, %v818
      %v828 = vmul.f32 %v792, %v818
      %v829 = vmul.f32 %v793, %v818
      %v830 = vmul.f32 %v794, %v818
      %v831 = vmul.f32 %v795, %v818
      %v832 = vmul.f32 %v796, %v818
      %v833 = vmul.f32 %v797, %v818
      %v834 = vmul.f32 %v798, %v818
      %v835 = vmul.f32 %v799, %v818
      %v836 = vmul.f32 %v800, %v818
      %v837 = vmul.f32 %v801, %v818
      %v838 = vmul.f32 %v802, %v818
      %v839 = vmul.f32 %v803, %v818
      %v840 = vmul.f32 %v804, %v818
      %v841 = vmul.f32 %v805, %v818
      %v842 = vmul.f32 %v806, %v818
      %v843 = vmul.f32 %v807, %v818
      %v844 = vmul.f32 %v808, %v818
      %v845 = vmul.f32 %v809, %v818
      %v846 = vmul.f32 %v810, %v818
      %v847 = vmul.f32 %v811, %v818
      %v848 = vmul.f32 %v812, %v818
      %v849 = vmul.f32 %v813, %v818
      %v850 = vmul.f32 %v814, %v818
      %v851 = vld [vmem:[%s4] sm:$0x1]
      %v853 = vlaneseq
      %v854 = vshrl.u32 %v853, 7
      %v855 = vsub.s32 0, %v854
      %v856 = vrot.slane %v851, %v855
      %v858 = vadd.f32 %v819, %v856
      %v859 = vadd.f32 %v820, %v856
      %v860 = vadd.f32 %v821, %v856
      %v861 = vadd.f32 %v822, %v856
      %v862 = vadd.f32 %v823, %v856
      %v863 = vadd.f32 %v824, %v856
      %v864 = vadd.f32 %v825, %v856
      %v865 = vadd.f32 %v826, %v856
      %v866 = vadd.f32 %v827, %v856
      %v867 = vadd.f32 %v828, %v856
      %v868 = vadd.f32 %v829, %v856
      %v869 = vadd.f32 %v830, %v856
      %v870 = vadd.f32 %v831, %v856
      %v871 = vadd.f32 %v832, %v856
      %v872 = vadd.f32 %v833, %v856
      %v873 = vadd.f32 %v834, %v856
      %v874 = vadd.f32 %v835, %v856
      %v875 = vadd.f32 %v836, %v856
      %v876 = vadd.f32 %v837, %v856
      %v877 = vadd.f32 %v838, %v856
      %v878 = vadd.f32 %v839, %v856
      %v879 = vadd.f32 %v840, %v856
      %v880 = vadd.f32 %v841, %v856
      %v881 = vadd.f32 %v842, %v856
      %v882 = vadd.f32 %v843, %v856
      %v883 = vadd.f32 %v844, %v856
      %v884 = vadd.f32 %v845, %v856
      %v885 = vadd.f32 %v846, %v856
      %v886 = vadd.f32 %v847, %v856
      %v887 = vadd.f32 %v848, %v856
      %v888 = vadd.f32 %v849, %v856
      %v889 = vadd.f32 %v850, %v856
      %v890 = vld [vmem:[#allocation2 + $0x1] sm:$0xff]
      %v891 = vld [vmem:[#allocation2 + $0x9] sm:$0xff]
      %v892 = vld [vmem:[#allocation2 + $0x19] sm:$0xff]
      %v893 = vld [vmem:[#allocation2 + $0x21] sm:$0xff]
      %v894 = vld [vmem:[#allocation2 + $0x31] sm:$0xff]
      %v895 = vld [vmem:[#allocation2 + $0x39] sm:$0xff]
      %v896 = vld [vmem:[#allocation2 + $0x49] sm:$0xff]
      %v897 = vld [vmem:[#allocation2 + $0x51] sm:$0xff]
      %v898 = vld [vmem:[#allocation2 + $0x61] sm:$0xff]
      %v899 = vld [vmem:[#allocation2 + $0x69] sm:$0xff]
      %v900 = vld [vmem:[#allocation2 + $0x79] sm:$0xff]
      %v901 = vld [vmem:[#allocation2 + $0x81] sm:$0xff]
      %v902 = vld [vmem:[#allocation2 + $0x91] sm:$0xff]
      %v903 = vld [vmem:[#allocation2 + $0x99] sm:$0xff]
      %v904 = vld [vmem:[#allocation2 + $0xa9] sm:$0xff]
      %v905 = vld [vmem:[#allocation2 + $0xb1] sm:$0xff]
      %v906 = vld [vmem:[#allocation2 + $0xc1] sm:$0xff]
      %v907 = vld [vmem:[#allocation2 + $0xc9] sm:$0xff]
      %v908 = vld [vmem:[#allocation2 + $0xd9] sm:$0xff]
      %v909 = vld [vmem:[#allocation2 + $0xe1] sm:$0xff]
      %v910 = vld [vmem:[#allocation2 + $0xf1] sm:$0xff]
      %v911 = vld [vmem:[#allocation2 + $0xf9] sm:$0xff]
      %v912 = vld [vmem:[#allocation2 + $0x109] sm:$0xff]
      %v913 = vld [vmem:[#allocation2 + $0x111] sm:$0xff]
      %v914 = vld [vmem:[#allocation2 + $0x121] sm:$0xff]
      %v915 = vld [vmem:[#allocation2 + $0x129] sm:$0xff]
      %v916 = vld [vmem:[#allocation2 + $0x139] sm:$0xff]
      %v917 = vld [vmem:[#allocation2 + $0x141] sm:$0xff]
      %v918 = vld [vmem:[#allocation2 + $0x151] sm:$0xff]
      %v919 = vld [vmem:[#allocation2 + $0x159] sm:$0xff]
      %v920 = vld [vmem:[#allocation2 + $0x169] sm:$0xff]
      %v921 = vld [vmem:[#allocation2 + $0x171] sm:$0xff]
      %v922 = vlaneseq
      %v923 = vshrl.u32 %v922, 7
      %v924 = vsub.s32 1, %v923
      %v925 = vrot.slane %v780, %v924
      %v926 = vmul.f32 %v890, %v925
      %v927 = vmul.f32 %v891, %v925
      %v928 = vmul.f32 %v892, %v925
      %v929 = vmul.f32 %v893, %v925
      %v930 = vmul.f32 %v894, %v925
      %v931 = vmul.f32 %v895, %v925
      %v932 = vmul.f32 %v896, %v925
      %v933 = vmul.f32 %v897, %v925
      %v934 = vmul.f32 %v898, %v925
      %v935 = vmul.f32 %v899, %v925
      %v936 = vmul.f32 %v900, %v925
      %v937 = vmul.f32 %v901, %v925
      %v938 = vmul.f32 %v902, %v925
      %v939 = vmul.f32 %v903, %v925
      %v940 = vmul.f32 %v904, %v925
      %v941 = vmul.f32 %v905, %v925
      %v942 = vmul.f32 %v906, %v925
      %v943 = vmul.f32 %v907, %v925
      %v944 = vmul.f32 %v908, %v925
      %v945 = vmul.f32 %v909, %v925
      %v946 = vmul.f32 %v910, %v925
      %v947 = vmul.f32 %v911, %v925
      %v948 = vmul.f32 %v912, %v925
      %v949 = vmul.f32 %v913, %v925
      %v950 = vmul.f32 %v914, %v925
      %v951 = vmul.f32 %v915, %v925
      %v952 = vmul.f32 %v916, %v925
      %v953 = vmul.f32 %v917, %v925
      %v954 = vmul.f32 %v918, %v925
      %v955 = vmul.f32 %v919, %v925
      %v956 = vmul.f32 %v920, %v925
      %v957 = vmul.f32 %v921, %v925
      %v958 = vadd.f32 %v858, %v926
      %v959 = vadd.f32 %v859, %v927
      %v960 = vadd.f32 %v860, %v928
      %v961 = vadd.f32 %v861, %v929
      %v962 = vadd.f32 %v862, %v930
      %v963 = vadd.f32 %v863, %v931
      %v964 = vadd.f32 %v864, %v932
      %v965 = vadd.f32 %v865, %v933
      %v966 = vadd.f32 %v866, %v934
      %v967 = vadd.f32 %v867, %v935
      %v968 = vadd.f32 %v868, %v936
      %v969 = vadd.f32 %v869, %v937
      %v970 = vadd.f32 %v870, %v938
      %v971 = vadd.f32 %v871, %v939
      %v972 = vadd.f32 %v872, %v940
      %v973 = vadd.f32 %v873, %v941
      %v974 = vadd.f32 %v874, %v942
      %v975 = vadd.f32 %v875, %v943
      %v976 = vadd.f32 %v876, %v944
      %v977 = vadd.f32 %v877, %v945
      %v978 = vadd.f32 %v878, %v946
      %v979 = vadd.f32 %v879, %v947
      %v980 = vadd.f32 %v880, %v948
      %v981 = vadd.f32 %v881, %v949
      %v982 = vadd.f32 %v882, %v950
      %v983 = vadd.f32 %v883, %v951
      %v984 = vadd.f32 %v884, %v952
      %v985 = vadd.f32 %v885, %v953
      %v986 = vadd.f32 %v886, %v954
      %v987 = vadd.f32 %v887, %v955
      %v988 = vadd.f32 %v888, %v956
      %v989 = vadd.f32 %v889, %v957
      %v990 = vld [vmem:[#allocation2 + $0x2] sm:$0xff]
      %v991 = vld [vmem:[#allocation2 + $0xa] sm:$0xff]
      %v992 = vld [vmem:[#allocation2 + $0x1a] sm:$0xff]
      %v993 = vld [vmem:[#allocation2 + $0x22] sm:$0xff]
      %v994 = vld [vmem:[#allocation2 + $0x32] sm:$0xff]
      %v995 = vld [vmem:[#allocation2 + $0x3a] sm:$0xff]
      %v996 = vld [vmem:[#allocation2 + $0x4a] sm:$0xff]
      %v997 = vld [vmem:[#allocation2 + $0x52] sm:$0xff]
      %v998 = vld [vmem:[#allocation2 + $0x62] sm:$0xff]
      %v999 = vld [vmem:[#allocation2 + $0x6a] sm:$0xff]
      %v1000 = vld [vmem:[#allocation2 + $0x7a] sm:$0xff]
      %v1001 = vld [vmem:[#allocation2 + $0x82] sm:$0xff]
      %v1002 = vld [vmem:[#allocation2 + $0x92] sm:$0xff]
      %v1003 = vld [vmem:[#allocation2 + $0x9a] sm:$0xff]
      %v1004 = vld [vmem:[#allocation2 + $0xaa] sm:$0xff]
      %v1005 = vld [vmem:[#allocation2 + $0xb2] sm:$0xff]
      %v1006 = vld [vmem:[#allocation2 + $0xc2] sm:$0xff]
      %v1007 = vld [vmem:[#allocation2 + $0xca] sm:$0xff]
      %v1008 = vld [vmem:[#allocation2 + $0xda] sm:$0xff]
      %v1009 = vld [vmem:[#allocation2 + $0xe2] sm:$0xff]
      %v1010 = vld [vmem:[#allocation2 + $0xf2] sm:$0xff]
      %v1011 = vld [vmem:[#allocation2 + $0xfa] sm:$0xff]
      %v1012 = vld [vmem:[#allocation2 + $0x10a] sm:$0xff]
      %v1013 = vld [vmem:[#allocation2 + $0x112] sm:$0xff]
      %v1014 = vld [vmem:[#allocation2 + $0x122] sm:$0xff]
      %v1015 = vld [vmem:[#allocation2 + $0x12a] sm:$0xff]
      %v1016 = vld [vmem:[#allocation2 + $0x13a] sm:$0xff]
      %v1017 = vld [vmem:[#allocation2 + $0x142] sm:$0xff]
      %v1018 = vld [vmem:[#allocation2 + $0x152] sm:$0xff]
      %v1019 = vld [vmem:[#allocation2 + $0x15a] sm:$0xff]
      %v1020 = vld [vmem:[#allocation2 + $0x16a] sm:$0xff]
      %v1021 = vld [vmem:[#allocation2 + $0x172] sm:$0xff]
      %v1022 = vlaneseq
      %v1023 = vshrl.u32 %v1022, 7
      %v1024 = vsub.s32 2, %v1023
      %v1025 = vrot.slane %v780, %v1024
      %v1026 = vmul.f32 %v990, %v1025
      %v1027 = vmul.f32 %v991, %v1025
      %v1028 = vmul.f32 %v992, %v1025
      %v1029 = vmul.f32 %v993, %v1025
      %v1030 = vmul.f32 %v994, %v1025
      %v1031 = vmul.f32 %v995, %v1025
      %v1032 = vmul.f32 %v996, %v1025
      %v1033 = vmul.f32 %v997, %v1025
      %v1034 = vmul.f32 %v998, %v1025
      %v1035 = vmul.f32 %v999, %v1025
      %v1036 = vmul.f32 %v1000, %v1025
      %v1037 = vmul.f32 %v1001, %v1025
      %v1038 = vmul.f32 %v1002, %v1025
      %v1039 = vmul.f32 %v1003, %v1025
      %v1040 = vmul.f32 %v1004, %v1025
      %v1041 = vmul.f32 %v1005, %v1025
      %v1042 = vmul.f32 %v1006, %v1025
      %v1043 = vmul.f32 %v1007, %v1025
      %v1044 = vmul.f32 %v1008, %v1025
      %v1045 = vmul.f32 %v1009, %v1025
      %v1046 = vmul.f32 %v1010, %v1025
      %v1047 = vmul.f32 %v1011, %v1025
      %v1048 = vmul.f32 %v1012, %v1025
      %v1049 = vmul.f32 %v1013, %v1025
      %v1050 = vmul.f32 %v1014, %v1025
      %v1051 = vmul.f32 %v1015, %v1025
      %v1052 = vmul.f32 %v1016, %v1025
      %v1053 = vmul.f32 %v1017, %v1025
      %v1054 = vmul.f32 %v1018, %v1025
      %v1055 = vmul.f32 %v1019, %v1025
      %v1056 = vmul.f32 %v1020, %v1025
      %v1057 = vmul.f32 %v1021, %v1025
      %v1058 = vadd.f32 %v958, %v1026
      %v1059 = vadd.f32 %v959, %v1027
      %v1060 = vadd.f32 %v960, %v1028
      %v1061 = vadd.f32 %v961, %v1029
      %v1062 = vadd.f32 %v962, %v1030
      %v1063 = vadd.f32 %v963, %v1031
      %v1064 = vadd.f32 %v964, %v1032
      %v1065 = vadd.f32 %v965, %v1033
      %v1066 = vadd.f32 %v966, %v1034
      %v1067 = vadd.f32 %v967, %v1035
      %v1068 = vadd.f32 %v968, %v1036
      %v1069 = vadd.f32 %v969, %v1037
      %v1070 = vadd.f32 %v970, %v1038
      %v1071 = vadd.f32 %v971, %v1039
      %v1072 = vadd.f32 %v972, %v1040
      %v1073 = vadd.f32 %v973, %v1041
      %v1074 = vadd.f32 %v974, %v1042
      %v1075 = vadd.f32 %v975, %v1043
      %v1076 = vadd.f32 %v976, %v1044
      %v1077 = vadd.f32 %v977, %v1045
      %v1078 = vadd.f32 %v978, %v1046
      %v1079 = vadd.f32 %v979, %v1047
      %v1080 = vadd.f32 %v980, %v1048
      %v1081 = vadd.f32 %v981, %v1049
      %v1082 = vadd.f32 %v982, %v1050
      %v1083 = vadd.f32 %v983, %v1051
      %v1084 = vadd.f32 %v984, %v1052
      %v1085 = vadd.f32 %v985, %v1053
      %v1086 = vadd.f32 %v986, %v1054
      %v1087 = vadd.f32 %v987, %v1055
      %v1088 = vadd.f32 %v988, %v1056
      %v1089 = vadd.f32 %v989, %v1057
      %v1090 = vld [vmem:[%s704] sm:$0xff]
      %v1091 = vld [vmem:[%s704 + $0x8] sm:$0xff]
      %v1092 = vld [vmem:[%s704 + $0x18] sm:$0xff]
      %v1093 = vld [vmem:[%s704 + $0x20] sm:$0xff]
      %v1094 = vld [vmem:[%s704 + $0x30] sm:$0xff]
      %v1095 = vld [vmem:[%s704 + $0x38] sm:$0xff]
      %v1096 = vld [vmem:[%s704 + $0x48] sm:$0xff]
      %v1097 = vld [vmem:[%s704 + $0x50] sm:$0xff]
      %v1098 = vld [vmem:[%s704 + $0x60] sm:$0xff]
      %v1099 = vld [vmem:[%s704 + $0x68] sm:$0xff]
      %v1100 = vld [vmem:[%s704 + $0x78] sm:$0xff]
      %v1101 = vld [vmem:[%s704 + $0x80] sm:$0xff]
      %v1102 = vld [vmem:[%s704 + $0x90] sm:$0xff]
      %v1103 = vld [vmem:[%s704 + $0x98] sm:$0xff]
      %v1104 = vld [vmem:[%s704 + $0xa8] sm:$0xff]
      %v1105 = vld [vmem:[%s704 + $0xb0] sm:$0xff]
      %v1106 = vld [vmem:[%s704 + $0xc0] sm:$0xff]
      %v1107 = vld [vmem:[%s704 + $0xc8] sm:$0xff]
      %v1108 = vld [vmem:[%s704 + $0xd8] sm:$0xff]
      %v1109 = vld [vmem:[%s704 + $0xe0] sm:$0xff]
      %v1110 = vld [vmem:[%s704 + $0xf0] sm:$0xff]
      %v1111 = vld [vmem:[%s704 + $0xf8] sm:$0xff]
      %v1112 = vld [vmem:[%s704 + $0x108] sm:$0xff]
      %v1113 = vld [vmem:[%s704 + $0x110] sm:$0xff]
      %v1114 = vld [vmem:[%s704 + $0x120] sm:$0xff]
      %v1115 = vld [vmem:[%s704 + $0x128] sm:$0xff]
      %v1116 = vld [vmem:[%s704 + $0x138] sm:$0xff]
      %v1117 = vld [vmem:[%s704 + $0x140] sm:$0xff]
      %v1118 = vld [vmem:[%s704 + $0x150] sm:$0xff]
      %v1119 = vld [vmem:[%s704 + $0x158] sm:$0xff]
      %v1120 = vld [vmem:[%s704 + $0x168] sm:$0xff]
      %v1121 = vld [vmem:[%s704 + $0x170] sm:$0xff]
      %v1122 = vlaneseq
      %v1123 = vshrl.u32 %v1122, 7
      %v1124 = vsub.s32 0, %v1123
      %v1125 = vrot.slane %v781, %v1124
      %v1126 = vmul.f32 %v1090, %v1125
      %v1127 = vmul.f32 %v1091, %v1125
      %v1128 = vmul.f32 %v1092, %v1125
      %v1129 = vmul.f32 %v1093, %v1125
      %v1130 = vmul.f32 %v1094, %v1125
      %v1131 = vmul.f32 %v1095, %v1125
      %v1132 = vmul.f32 %v1096, %v1125
      %v1133 = vmul.f32 %v1097, %v1125
      %v1134 = vmul.f32 %v1098, %v1125
      %v1135 = vmul.f32 %v1099, %v1125
      %v1136 = vmul.f32 %v1100, %v1125
      %v1137 = vmul.f32 %v1101, %v1125
      %v1138 = vmul.f32 %v1102, %v1125
      %v1139 = vmul.f32 %v1103, %v1125
      %v1140 = vmul.f32 %v1104, %v1125
      %v1141 = vmul.f32 %v1105, %v1125
      %v1142 = vmul.f32 %v1106, %v1125
      %v1143 = vmul.f32 %v1107, %v1125
      %v1144 = vmul.f32 %v1108, %v1125
      %v1145 = vmul.f32 %v1109, %v1125
      %v1146 = vmul.f32 %v1110, %v1125
      %v1147 = vmul.f32 %v1111, %v1125
      %v1148 = vmul.f32 %v1112, %v1125
      %v1149 = vmul.f32 %v1113, %v1125
      %v1150 = vmul.f32 %v1114, %v1125
      %v1151 = vmul.f32 %v1115, %v1125
      %v1152 = vmul.f32 %v1116, %v1125
      %v1153 = vmul.f32 %v1117, %v1125
      %v1154 = vmul.f32 %v1118, %v1125
      %v1155 = vmul.f32 %v1119, %v1125
      %v1156 = vmul.f32 %v1120, %v1125
      %v1157 = vmul.f32 %v1121, %v1125
      %v1158 = vadd.f32 %v1058, %v1126
      %v1159 = vadd.f32 %v1059, %v1127
      %v1160 = vadd.f32 %v1060, %v1128
      %v1161 = vadd.f32 %v1061, %v1129
      %v1162 = vadd.f32 %v1062, %v1130
      %v1163 = vadd.f32 %v1063, %v1131
      %v1164 = vadd.f32 %v1064, %v1132
      %v1165 = vadd.f32 %v1065, %v1133
      %v1166 = vadd.f32 %v1066, %v1134
      %v1167 = vadd.f32 %v1067, %v1135
      %v1168 = vadd.f32 %v1068, %v1136
      %v1169 = vadd.f32 %v1069, %v1137
      %v1170 = vadd.f32 %v1070, %v1138
      %v1171 = vadd.f32 %v1071, %v1139
      %v1172 = vadd.f32 %v1072, %v1140
      %v1173 = vadd.f32 %v1073, %v1141
      %v1174 = vadd.f32 %v1074, %v1142
      %v1175 = vadd.f32 %v1075, %v1143
      %v1176 = vadd.f32 %v1076, %v1144
      %v1177 = vadd.f32 %v1077, %v1145
      %v1178 = vadd.f32 %v1078, %v1146
      %v1179 = vadd.f32 %v1079, %v1147
      %v1180 = vadd.f32 %v1080, %v1148
      %v1181 = vadd.f32 %v1081, %v1149
      %v1182 = vadd.f32 %v1082, %v1150
      %v1183 = vadd.f32 %v1083, %v1151
      %v1184 = vadd.f32 %v1084, %v1152
      %v1185 = vadd.f32 %v1085, %v1153
      %v1186 = vadd.f32 %v1086, %v1154
      %v1187 = vadd.f32 %v1087, %v1155
      %v1188 = vadd.f32 %v1088, %v1156
      %v1189 = vadd.f32 %v1089, %v1157
      %v1190 = vld [vmem:[%s704 + $0x1] sm:$0xff]
      %v1191 = vld [vmem:[%s704 + $0x9] sm:$0xff]
      %v1192 = vld [vmem:[%s704 + $0x19] sm:$0xff]
      %v1193 = vld [vmem:[%s704 + $0x21] sm:$0xff]
      %v1194 = vld [vmem:[%s704 + $0x31] sm:$0xff]
      %v1195 = vld [vmem:[%s704 + $0x39] sm:$0xff]
      %v1196 = vld [vmem:[%s704 + $0x49] sm:$0xff]
      %v1197 = vld [vmem:[%s704 + $0x51] sm:$0xff]
      %v1198 = vld [vmem:[%s704 + $0x61] sm:$0xff]
      %v1199 = vld [vmem:[%s704 + $0x69] sm:$0xff]
      %v1200 = vld [vmem:[%s704 + $0x79] sm:$0xff]
      %v1201 = vld [vmem:[%s704 + $0x81] sm:$0xff]
      %v1202 = vld [vmem:[%s704 + $0x91] sm:$0xff]
      %v1203 = vld [vmem:[%s704 + $0x99] sm:$0xff]
      %v1204 = vld [vmem:[%s704 + $0xa9] sm:$0xff]
      %v1205 = vld [vmem:[%s704 + $0xb1] sm:$0xff]
      %v1206 = vld [vmem:[%s704 + $0xc1] sm:$0xff]
      %v1207 = vld [vmem:[%s704 + $0xc9] sm:$0xff]
      %v1208 = vld [vmem:[%s704 + $0xd9] sm:$0xff]
      %v1209 = vld [vmem:[%s704 + $0xe1] sm:$0xff]
      %v1210 = vld [vmem:[%s704 + $0xf1] sm:$0xff]
      %v1211 = vld [vmem:[%s704 + $0xf9] sm:$0xff]
      %v1212 = vld [vmem:[%s704 + $0x109] sm:$0xff]
      %v1213 = vld [vmem:[%s704 + $0x111] sm:$0xff]
      %v1214 = vld [vmem:[%s704 + $0x121] sm:$0xff]
      %v1215 = vld [vmem:[%s704 + $0x129] sm:$0xff]
      %v1216 = vld [vmem:[%s704 + $0x139] sm:$0xff]
      %v1217 = vld [vmem:[%s704 + $0x141] sm:$0xff]
      %v1218 = vld [vmem:[%s704 + $0x151] sm:$0xff]
      %v1219 = vld [vmem:[%s704 + $0x159] sm:$0xff]
      %v1220 = vld [vmem:[%s704 + $0x169] sm:$0xff]
      %v1221 = vld [vmem:[%s704 + $0x171] sm:$0xff]
      %v1222 = vlaneseq
      %v1223 = vshrl.u32 %v1222, 7
      %v1224 = vsub.s32 1, %v1223
      %v1225 = vrot.slane %v781, %v1224
      %v1226 = vmul.f32 %v1190, %v1225
      %v1227 = vmul.f32 %v1191, %v1225
      %v1228 = vmul.f32 %v1192, %v1225
      %v1229 = vmul.f32 %v1193, %v1225
      %v1230 = vmul.f32 %v1194, %v1225
      %v1231 = vmul.f32 %v1195, %v1225
      %v1232 = vmul.f32 %v1196, %v1225
      %v1233 = vmul.f32 %v1197, %v1225
      %v1234 = vmul.f32 %v1198, %v1225
      %v1235 = vmul.f32 %v1199, %v1225
      %v1236 = vmul.f32 %v1200, %v1225
      %v1237 = vmul.f32 %v1201, %v1225
      %v1238 = vmul.f32 %v1202, %v1225
      %v1239 = vmul.f32 %v1203, %v1225
      %v1240 = vmul.f32 %v1204, %v1225
      %v1241 = vmul.f32 %v1205, %v1225
      %v1242 = vmul.f32 %v1206, %v1225
      %v1243 = vmul.f32 %v1207, %v1225
      %v1244 = vmul.f32 %v1208, %v1225
      %v1245 = vmul.f32 %v1209, %v1225
      %v1246 = vmul.f32 %v1210, %v1225
      %v1247 = vmul.f32 %v1211, %v1225
      %v1248 = vmul.f32 %v1212, %v1225
      %v1249 = vmul.f32 %v1213, %v1225
      %v1250 = vmul.f32 %v1214, %v1225
      %v1251 = vmul.f32 %v1215, %v1225
      %v1252 = vmul.f32 %v1216, %v1225
      %v1253 = vmul.f32 %v1217, %v1225
      %v1254 = vmul.f32 %v1218, %v1225
      %v1255 = vmul.f32 %v1219, %v1225
      %v1256 = vmul.f32 %v1220, %v1225
      %v1257 = vmul.f32 %v1221, %v1225
      %v1258 = vadd.f32 %v1158, %v1226
      %v1259 = vadd.f32 %v1159, %v1227
      %v1260 = vadd.f32 %v1160, %v1228
      %v1261 = vadd.f32 %v1161, %v1229
      %v1262 = vadd.f32 %v1162, %v1230
      %v1263 = vadd.f32 %v1163, %v1231
      %v1264 = vadd.f32 %v1164, %v1232
      %v1265 = vadd.f32 %v1165, %v1233
      %v1266 = vadd.f32 %v1166, %v1234
      %v1267 = vadd.f32 %v1167, %v1235
      %v1268 = vadd.f32 %v1168, %v1236
      %v1269 = vadd.f32 %v1169, %v1237
      %v1270 = vadd.f32 %v1170, %v1238
      %v1271 = vadd.f32 %v1171, %v1239
      %v1272 = vadd.f32 %v1172, %v1240
      %v1273 = vadd.f32 %v1173, %v1241
      %v1274 = vadd.f32 %v1174, %v1242
      %v1275 = vadd.f32 %v1175, %v1243
      %v1276 = vadd.f32 %v1176, %v1244
      %v1277 = vadd.f32 %v1177, %v1245
      %v1278 = vadd.f32 %v1178, %v1246
      %v1279 = vadd.f32 %v1179, %v1247
      %v1280 = vadd.f32 %v1180, %v1248
      %v1281 = vadd.f32 %v1181, %v1249
      %v1282 = vadd.f32 %v1182, %v1250
      %v1283 = vadd.f32 %v1183, %v1251
      %v1284 = vadd.f32 %v1184, %v1252
      %v1285 = vadd.f32 %v1185, %v1253
      %v1286 = vadd.f32 %v1186, %v1254
      %v1287 = vadd.f32 %v1187, %v1255
      %v1288 = vadd.f32 %v1188, %v1256
      %v1289 = vadd.f32 %v1189, %v1257
      %v1290 = vld [vmem:[%s704 + $0x2] sm:$0xff]
      %v1291 = vld [vmem:[%s704 + $0xa] sm:$0xff]
      %v1292 = vld [vmem:[%s704 + $0x1a] sm:$0xff]
      %v1293 = vld [vmem:[%s704 + $0x22] sm:$0xff]
      %v1294 = vld [vmem:[%s704 + $0x32] sm:$0xff]
      %v1295 = vld [vmem:[%s704 + $0x3a] sm:$0xff]
      %v1296 = vld [vmem:[%s704 + $0x4a] sm:$0xff]
      %v1297 = vld [vmem:[%s704 + $0x52] sm:$0xff]
      %v1298 = vld [vmem:[%s704 + $0x62] sm:$0xff]
      %v1299 = vld [vmem:[%s704 + $0x6a] sm:$0xff]
      %v1300 = vld [vmem:[%s704 + $0x7a] sm:$0xff]
      %v1301 = vld [vmem:[%s704 + $0x82] sm:$0xff]
      %v1302 = vld [vmem:[%s704 + $0x92] sm:$0xff]
      %v1303 = vld [vmem:[%s704 + $0x9a] sm:$0xff]
      %v1304 = vld [vmem:[%s704 + $0xaa] sm:$0xff]
      %v1305 = vld [vmem:[%s704 + $0xb2] sm:$0xff]
      %v1306 = vld [vmem:[%s704 + $0xc2] sm:$0xff]
      %v1307 = vld [vmem:[%s704 + $0xca] sm:$0xff]
      %v1308 = vld [vmem:[%s704 + $0xda] sm:$0xff]
      %v1309 = vld [vmem:[%s704 + $0xe2] sm:$0xff]
      %v1310 = vld [vmem:[%s704 + $0xf2] sm:$0xff]
      %v1311 = vld [vmem:[%s704 + $0xfa] sm:$0xff]
      %v1312 = vld [vmem:[%s704 + $0x10a] sm:$0xff]
      %v1313 = vld [vmem:[%s704 + $0x112] sm:$0xff]
      %v1314 = vld [vmem:[%s704 + $0x122] sm:$0xff]
      %v1315 = vld [vmem:[%s704 + $0x12a] sm:$0xff]
      %v1316 = vld [vmem:[%s704 + $0x13a] sm:$0xff]
      %v1317 = vld [vmem:[%s704 + $0x142] sm:$0xff]
      %v1318 = vld [vmem:[%s704 + $0x152] sm:$0xff]
      %v1319 = vld [vmem:[%s704 + $0x15a] sm:$0xff]
      %v1320 = vld [vmem:[%s704 + $0x16a] sm:$0xff]
      %v1321 = vld [vmem:[%s704 + $0x172] sm:$0xff]
      %v1322 = vlaneseq
      %v1323 = vshrl.u32 %v1322, 7
      %v1324 = vsub.s32 2, %v1323
      %v1325 = vrot.slane %v781, %v1324
      %v1326 = vmul.f32 %v1290, %v1325
      %v1327 = vmul.f32 %v1291, %v1325
      %v1328 = vmul.f32 %v1292, %v1325
      %v1329 = vmul.f32 %v1293, %v1325
      %v1330 = vmul.f32 %v1294, %v1325
      %v1331 = vmul.f32 %v1295, %v1325
      %v1332 = vmul.f32 %v1296, %v1325
      %v1333 = vmul.f32 %v1297, %v1325
      %v1334 = vmul.f32 %v1298, %v1325
      %v1335 = vmul.f32 %v1299, %v1325
      %v1336 = vmul.f32 %v1300, %v1325
      %v1337 = vmul.f32 %v1301, %v1325
      %v1338 = vmul.f32 %v1302, %v1325
      %v1339 = vmul.f32 %v1303, %v1325
      %v1340 = vmul.f32 %v1304, %v1325
      %v1341 = vmul.f32 %v1305, %v1325
      %v1342 = vmul.f32 %v1306, %v1325
      %v1343 = vmul.f32 %v1307, %v1325
      %v1344 = vmul.f32 %v1308, %v1325
      %v1345 = vmul.f32 %v1309, %v1325
      %v1346 = vmul.f32 %v1310, %v1325
      %v1347 = vmul.f32 %v1311, %v1325
      %v1348 = vmul.f32 %v1312, %v1325
      %v1349 = vmul.f32 %v1313, %v1325
      %v1350 = vmul.f32 %v1314, %v1325
      %v1351 = vmul.f32 %v1315, %v1325
      %v1352 = vmul.f32 %v1316, %v1325
      %v1353 = vmul.f32 %v1317, %v1325
      %v1354 = vmul.f32 %v1318, %v1325
      %v1355 = vmul.f32 %v1319, %v1325
      %v1356 = vmul.f32 %v1320, %v1325
      %v1357 = vmul.f32 %v1321, %v1325
      %v1358 = vadd.f32 %v1258, %v1326
      %v1359 = vadd.f32 %v1259, %v1327
      %v1360 = vadd.f32 %v1260, %v1328
      %v1361 = vadd.f32 %v1261, %v1329
      %v1362 = vadd.f32 %v1262, %v1330
      %v1363 = vadd.f32 %v1263, %v1331
      %v1364 = vadd.f32 %v1264, %v1332
      %v1365 = vadd.f32 %v1265, %v1333
      %v1366 = vadd.f32 %v1266, %v1334
      %v1367 = vadd.f32 %v1267, %v1335
      %v1368 = vadd.f32 %v1268, %v1336
      %v1369 = vadd.f32 %v1269, %v1337
      %v1370 = vadd.f32 %v1270, %v1338
      %v1371 = vadd.f32 %v1271, %v1339
      %v1372 = vadd.f32 %v1272, %v1340
      %v1373 = vadd.f32 %v1273, %v1341
      %v1374 = vadd.f32 %v1274, %v1342
      %v1375 = vadd.f32 %v1275, %v1343
      %v1376 = vadd.f32 %v1276, %v1344
      %v1377 = vadd.f32 %v1277, %v1345
      %v1378 = vadd.f32 %v1278, %v1346
      %v1379 = vadd.f32 %v1279, %v1347
      %v1380 = vadd.f32 %v1280, %v1348
      %v1381 = vadd.f32 %v1281, %v1349
      %v1382 = vadd.f32 %v1282, %v1350
      %v1383 = vadd.f32 %v1283, %v1351
      %v1384 = vadd.f32 %v1284, %v1352
      %v1385 = vadd.f32 %v1285, %v1353
      %v1386 = vadd.f32 %v1286, %v1354
      %v1387 = vadd.f32 %v1287, %v1355
      %v1388 = vadd.f32 %v1288, %v1356
      %v1389 = vadd.f32 %v1289, %v1357
      %s1390 = scalar_lea.vmem [#allocation2], 48
      %v1391 = vld [vmem:[%s1390] sm:$0xff]
      %v1392 = vld [vmem:[%s1390 + $0x8] sm:$0xff]
      %v1393 = vld [vmem:[%s1390 + $0x18] sm:$0xff]
      %v1394 = vld [vmem:[%s1390 + $0x20] sm:$0xff]
      %v1395 = vld [vmem:[%s1390 + $0x30] sm:$0xff]
      %v1396 = vld [vmem:[%s1390 + $0x38] sm:$0xff]
      %v1397 = vld [vmem:[%s1390 + $0x48] sm:$0xff]
      %v1398 = vld [vmem:[%s1390 + $0x50] sm:$0xff]
      %v1399 = vld [vmem:[%s1390 + $0x60] sm:$0xff]
      %v1400 = vld [vmem:[%s1390 + $0x68] sm:$0xff]
      %v1401 = vld [vmem:[%s1390 + $0x78] sm:$0xff]
      %v1402 = vld [vmem:[%s1390 + $0x80] sm:$0xff]
      %v1403 = vld [vmem:[%s1390 + $0x90] sm:$0xff]
      %v1404 = vld [vmem:[%s1390 + $0x98] sm:$0xff]
      %v1405 = vld [vmem:[%s1390 + $0xa8] sm:$0xff]
      %v1406 = vld [vmem:[%s1390 + $0xb0] sm:$0xff]
      %v1407 = vld [vmem:[%s1390 + $0xc0] sm:$0xff]
      %v1408 = vld [vmem:[%s1390 + $0xc8] sm:$0xff]
      %v1409 = vld [vmem:[%s1390 + $0xd8] sm:$0xff]
      %v1410 = vld [vmem:[%s1390 + $0xe0] sm:$0xff]
      %v1411 = vld [vmem:[%s1390 + $0xf0] sm:$0xff]
      %v1412 = vld [vmem:[%s1390 + $0xf8] sm:$0xff]
      %v1413 = vld [vmem:[%s1390 + $0x108] sm:$0xff]
      %v1414 = vld [vmem:[%s1390 + $0x110] sm:$0xff]
      %v1415 = vld [vmem:[%s1390 + $0x120] sm:$0xff]
      %v1416 = vld [vmem:[%s1390 + $0x128] sm:$0xff]
      %v1417 = vld [vmem:[%s1390 + $0x138] sm:$0xff]
      %v1418 = vld [vmem:[%s1390 + $0x140] sm:$0xff]
      %v1419 = vld [vmem:[%s1390 + $0x150] sm:$0xff]
      %v1420 = vld [vmem:[%s1390 + $0x158] sm:$0xff]
      %v1421 = vld [vmem:[%s1390 + $0x168] sm:$0xff]
      %v1422 = vld [vmem:[%s1390 + $0x170] sm:$0xff]
      %v1423 = vlaneseq
      %v1424 = vshrl.u32 %v1423, 7
      %v1425 = vsub.s32 0, %v1424
      %v1426 = vrot.slane %v782, %v1425
      %v1427 = vmul.f32 %v1391, %v1426
      %v1428 = vmul.f32 %v1392, %v1426
      %v1429 = vmul.f32 %v1393, %v1426
      %v1430 = vmul.f32 %v1394, %v1426
      %v1431 = vmul.f32 %v1395, %v1426
      %v1432 = vmul.f32 %v1396, %v1426
      %v1433 = vmul.f32 %v1397, %v1426
      %v1434 = vmul.f32 %v1398, %v1426
      %v1435 = vmul.f32 %v1399, %v1426
      %v1436 = vmul.f32 %v1400, %v1426
      %v1437 = vmul.f32 %v1401, %v1426
      %v1438 = vmul.f32 %v1402, %v1426
      %v1439 = vmul.f32 %v1403, %v1426
      %v1440 = vmul.f32 %v1404, %v1426
      %v1441 = vmul.f32 %v1405, %v1426
      %v1442 = vmul.f32 %v1406, %v1426
      %v1443 = vmul.f32 %v1407, %v1426
      %v1444 = vmul.f32 %v1408, %v1426
      %v1445 = vmul.f32 %v1409, %v1426
      %v1446 = vmul.f32 %v1410, %v1426
      %v1447 = vmul.f32 %v1411, %v1426
      %v1448 = vmul.f32 %v1412, %v1426
      %v1449 = vmul.f32 %v1413, %v1426
      %v1450 = vmul.f32 %v1414, %v1426
      %v1451 = vmul.f32 %v1415, %v1426
      %v1452 = vmul.f32 %v1416, %v1426
      %v1453 = vmul.f32 %v1417, %v1426
      %v1454 = vmul.f32 %v1418, %v1426
      %v1455 = vmul.f32 %v1419, %v1426
      %v1456 = vmul.f32 %v1420, %v1426
      %v1457 = vmul.f32 %v1421, %v1426
      %v1458 = vmul.f32 %v1422, %v1426
      %v1459 = vadd.f32 %v1358, %v1427
      %v1460 = vadd.f32 %v1359, %v1428
      %v1461 = vadd.f32 %v1360, %v1429
      %v1462 = vadd.f32 %v1361, %v1430
      %v1463 = vadd.f32 %v1362, %v1431
      %v1464 = vadd.f32 %v1363, %v1432
      %v1465 = vadd.f32 %v1364, %v1433
      %v1466 = vadd.f32 %v1365, %v1434
      %v1467 = vadd.f32 %v1366, %v1435
      %v1468 = vadd.f32 %v1367, %v1436
      %v1469 = vadd.f32 %v1368, %v1437
      %v1470 = vadd.f32 %v1369, %v1438
      %v1471 = vadd.f32 %v1370, %v1439
      %v1472 = vadd.f32 %v1371, %v1440
      %v1473 = vadd.f32 %v1372, %v1441
      %v1474 = vadd.f32 %v1373, %v1442
      %v1475 = vadd.f32 %v1374, %v1443
      %v1476 = vadd.f32 %v1375, %v1444
      %v1477 = vadd.f32 %v1376, %v1445
      %v1478 = vadd.f32 %v1377, %v1446
      %v1479 = vadd.f32 %v1378, %v1447
      %v1480 = vadd.f32 %v1379, %v1448
      %v1481 = vadd.f32 %v1380, %v1449
      %v1482 = vadd.f32 %v1381, %v1450
      %v1483 = vadd.f32 %v1382, %v1451
      %v1484 = vadd.f32 %v1383, %v1452
      %v1485 = vadd.f32 %v1384, %v1453
      %v1486 = vadd.f32 %v1385, %v1454
      %v1487 = vadd.f32 %v1386, %v1455
      %v1488 = vadd.f32 %v1387, %v1456
      %v1489 = vadd.f32 %v1388, %v1457
      %v1490 = vadd.f32 %v1389, %v1458
      %v1491 = vld [vmem:[%s1390 + $0x1] sm:$0xff]
      %v1492 = vld [vmem:[%s1390 + $0x9] sm:$0xff]
      %v1493 = vld [vmem:[%s1390 + $0x19] sm:$0xff]
      %v1494 = vld [vmem:[%s1390 + $0x21] sm:$0xff]
      %v1495 = vld [vmem:[%s1390 + $0x31] sm:$0xff]
      %v1496 = vld [vmem:[%s1390 + $0x39] sm:$0xff]
      %v1497 = vld [vmem:[%s1390 + $0x49] sm:$0xff]
      %v1498 = vld [vmem:[%s1390 + $0x51] sm:$0xff]
      %v1499 = vld [vmem:[%s1390 + $0x61] sm:$0xff]
      %v1500 = vld [vmem:[%s1390 + $0x69] sm:$0xff]
      %v1501 = vld [vmem:[%s1390 + $0x79] sm:$0xff]
      %v1502 = vld [vmem:[%s1390 + $0x81] sm:$0xff]
      %v1503 = vld [vmem:[%s1390 + $0x91] sm:$0xff]
      %v1504 = vld [vmem:[%s1390 + $0x99] sm:$0xff]
      %v1505 = vld [vmem:[%s1390 + $0xa9] sm:$0xff]
      %v1506 = vld [vmem:[%s1390 + $0xb1] sm:$0xff]
      %v1507 = vld [vmem:[%s1390 + $0xc1] sm:$0xff]
      %v1508 = vld [vmem:[%s1390 + $0xc9] sm:$0xff]
      %v1509 = vld [vmem:[%s1390 + $0xd9] sm:$0xff]
      %v1510 = vld [vmem:[%s1390 + $0xe1] sm:$0xff]
      %v1511 = vld [vmem:[%s1390 + $0xf1] sm:$0xff]
      %v1512 = vld [vmem:[%s1390 + $0xf9] sm:$0xff]
      %v1513 = vld [vmem:[%s1390 + $0x109] sm:$0xff]
      %v1514 = vld [vmem:[%s1390 + $0x111] sm:$0xff]
      %v1515 = vld [vmem:[%s1390 + $0x121] sm:$0xff]
      %v1516 = vld [vmem:[%s1390 + $0x129] sm:$0xff]
      %v1517 = vld [vmem:[%s1390 + $0x139] sm:$0xff]
      %v1518 = vld [vmem:[%s1390 + $0x141] sm:$0xff]
      %v1519 = vld [vmem:[%s1390 + $0x151] sm:$0xff]
      %v1520 = vld [vmem:[%s1390 + $0x159] sm:$0xff]
      %v1521 = vld [vmem:[%s1390 + $0x169] sm:$0xff]
      %v1522 = vld [vmem:[%s1390 + $0x171] sm:$0xff]
      %v1523 = vlaneseq
      %v1524 = vshrl.u32 %v1523, 7
      %v1525 = vsub.s32 1, %v1524
      %v1526 = vrot.slane %v782, %v1525
      %v1527 = vmul.f32 %v1491, %v1526
      %v1528 = vmul.f32 %v1492, %v1526
      %v1529 = vmul.f32 %v1493, %v1526
      %v1530 = vmul.f32 %v1494, %v1526
      %v1531 = vmul.f32 %v1495, %v1526
      %v1532 = vmul.f32 %v1496, %v1526
      %v1533 = vmul.f32 %v1497, %v1526
      %v1534 = vmul.f32 %v1498, %v1526
      %v1535 = vmul.f32 %v1499, %v1526
      %v1536 = vmul.f32 %v1500, %v1526
      %v1537 = vmul.f32 %v1501, %v1526
      %v1538 = vmul.f32 %v1502, %v1526
      %v1539 = vmul.f32 %v1503, %v1526
      %v1540 = vmul.f32 %v1504, %v1526
      %v1541 = vmul.f32 %v1505, %v1526
      %v1542 = vmul.f32 %v1506, %v1526
      %v1543 = vmul.f32 %v1507, %v1526
      %v1544 = vmul.f32 %v1508, %v1526
      %v1545 = vmul.f32 %v1509, %v1526
      %v1546 = vmul.f32 %v1510, %v1526
      %v1547 = vmul.f32 %v1511, %v1526
      %v1548 = vmul.f32 %v1512, %v1526
      %v1549 = vmul.f32 %v1513, %v1526
      %v1550 = vmul.f32 %v1514, %v1526
      %v1551 = vmul.f32 %v1515, %v1526
      %v1552 = vmul.f32 %v1516, %v1526
      %v1553 = vmul.f32 %v1517, %v1526
      %v1554 = vmul.f32 %v1518, %v1526
      %v1555 = vmul.f32 %v1519, %v1526
      %v1556 = vmul.f32 %v1520, %v1526
      %v1557 = vmul.f32 %v1521, %v1526
      %v1558 = vmul.f32 %v1522, %v1526
      %v1559 = vadd.f32 %v1459, %v1527
      %v1560 = vadd.f32 %v1460, %v1528
      %v1561 = vadd.f32 %v1461, %v1529
      %v1562 = vadd.f32 %v1462, %v1530
      %v1563 = vadd.f32 %v1463, %v1531
      %v1564 = vadd.f32 %v1464, %v1532
      %v1565 = vadd.f32 %v1465, %v1533
      %v1566 = vadd.f32 %v1466, %v1534
      %v1567 = vadd.f32 %v1467, %v1535
      %v1568 = vadd.f32 %v1468, %v1536
      %v1569 = vadd.f32 %v1469, %v1537
      %v1570 = vadd.f32 %v1470, %v1538
      %v1571 = vadd.f32 %v1471, %v1539
      %v1572 = vadd.f32 %v1472, %v1540
      %v1573 = vadd.f32 %v1473, %v1541
      %v1574 = vadd.f32 %v1474, %v1542
      %v1575 = vadd.f32 %v1475, %v1543
      %v1576 = vadd.f32 %v1476, %v1544
      %v1577 = vadd.f32 %v1477, %v1545
      %v1578 = vadd.f32 %v1478, %v1546
      %v1579 = vadd.f32 %v1479, %v1547
      %v1580 = vadd.f32 %v1480, %v1548
      %v1581 = vadd.f32 %v1481, %v1549
      %v1582 = vadd.f32 %v1482, %v1550
      %v1583 = vadd.f32 %v1483, %v1551
      %v1584 = vadd.f32 %v1484, %v1552
      %v1585 = vadd.f32 %v1485, %v1553
      %v1586 = vadd.f32 %v1486, %v1554
      %v1587 = vadd.f32 %v1487, %v1555
      %v1588 = vadd.f32 %v1488, %v1556
      %v1589 = vadd.f32 %v1489, %v1557
      %v1590 = vadd.f32 %v1490, %v1558
      %v1591 = vld [vmem:[%s1390 + $0x2] sm:$0xff]
      %v1592 = vld [vmem:[%s1390 + $0xa] sm:$0xff]
      %v1593 = vld [vmem:[%s1390 + $0x1a] sm:$0xff]
      %v1594 = vld [vmem:[%s1390 + $0x22] sm:$0xff]
      %v1595 = vld [vmem:[%s1390 + $0x32] sm:$0xff]
      %v1596 = vld [vmem:[%s1390 + $0x3a] sm:$0xff]
      %v1597 = vld [vmem:[%s1390 + $0x4a] sm:$0xff]
      %v1598 = vld [vmem:[%s1390 + $0x52] sm:$0xff]
      %v1599 = vld [vmem:[%s1390 + $0x62] sm:$0xff]
      %v1600 = vld [vmem:[%s1390 + $0x6a] sm:$0xff]
      %v1601 = vld [vmem:[%s1390 + $0x7a] sm:$0xff]
      %v1602 = vld [vmem:[%s1390 + $0x82] sm:$0xff]
      %v1603 = vld [vmem:[%s1390 + $0x92] sm:$0xff]
      %v1604 = vld [vmem:[%s1390 + $0x9a] sm:$0xff]
      %v1605 = vld [vmem:[%s1390 + $0xaa] sm:$0xff]
      %v1606 = vld [vmem:[%s1390 + $0xb2] sm:$0xff]
      %v1607 = vld [vmem:[%s1390 + $0xc2] sm:$0xff]
      %v1608 = vld [vmem:[%s1390 + $0xca] sm:$0xff]
      %v1609 = vld [vmem:[%s1390 + $0xda] sm:$0xff]
      %v1610 = vld [vmem:[%s1390 + $0xe2] sm:$0xff]
      %v1611 = vld [vmem:[%s1390 + $0xf2] sm:$0xff]
      %v1612 = vld [vmem:[%s1390 + $0xfa] sm:$0xff]
      %v1613 = vld [vmem:[%s1390 + $0x10a] sm:$0xff]
      %v1614 = vld [vmem:[%s1390 + $0x112] sm:$0xff]
      %v1615 = vld [vmem:[%s1390 + $0x122] sm:$0xff]
      %v1616 = vld [vmem:[%s1390 + $0x12a] sm:$0xff]
      %v1617 = vld [vmem:[%s1390 + $0x13a] sm:$0xff]
      %v1618 = vld [vmem:[%s1390 + $0x142] sm:$0xff]
      %v1619 = vld [vmem:[%s1390 + $0x152] sm:$0xff]
      %v1620 = vld [vmem:[%s1390 + $0x15a] sm:$0xff]
      %v1621 = vld [vmem:[%s1390 + $0x16a] sm:$0xff]
      %v1622 = vld [vmem:[%s1390 + $0x172] sm:$0xff]
      %v1623 = vlaneseq
      %v1624 = vshrl.u32 %v1623, 7
      %v1625 = vsub.s32 2, %v1624
      %v1626 = vrot.slane %v782, %v1625
      %v1627 = vmul.f32 %v1591, %v1626
      %v1628 = vmul.f32 %v1592, %v1626
      %v1629 = vmul.f32 %v1593, %v1626
      %v1630 = vmul.f32 %v1594, %v1626
      %v1631 = vmul.f32 %v1595, %v1626
      %v1632 = vmul.f32 %v1596, %v1626
      %v1633 = vmul.f32 %v1597, %v1626
      %v1634 = vmul.f32 %v1598, %v1626
      %v1635 = vmul.f32 %v1599, %v1626
      %v1636 = vmul.f32 %v1600, %v1626
      %v1637 = vmul.f32 %v1601, %v1626
      %v1638 = vmul.f32 %v1602, %v1626
      %v1639 = vmul.f32 %v1603, %v1626
      %v1640 = vmul.f32 %v1604, %v1626
      %v1641 = vmul.f32 %v1605, %v1626
      %v1642 = vmul.f32 %v1606, %v1626
      %v1643 = vmul.f32 %v1607, %v1626
      %v1644 = vmul.f32 %v1608, %v1626
      %v1645 = vmul.f32 %v1609, %v1626
      %v1646 = vmul.f32 %v1610, %v1626
      %v1647 = vmul.f32 %v1611, %v1626
      %v1648 = vmul.f32 %v1612, %v1626
      %v1649 = vmul.f32 %v1613, %v1626
      %v1650 = vmul.f32 %v1614, %v1626
      %v1651 = vmul.f32 %v1615, %v1626
      %v1652 = vmul.f32 %v1616, %v1626
      %v1653 = vmul.f32 %v1617, %v1626
      %v1654 = vmul.f32 %v1618, %v1626
      %v1655 = vmul.f32 %v1619, %v1626
      %v1656 = vmul.f32 %v1620, %v1626
      %v1657 = vmul.f32 %v1621, %v1626
      %v1658 = vmul.f32 %v1622, %v1626
      %v1659 = vadd.f32 %v1559, %v1627
      %v1660 = vadd.f32 %v1560, %v1628
      %v1661 = vadd.f32 %v1561, %v1629
      %v1662 = vadd.f32 %v1562, %v1630
      %v1663 = vadd.f32 %v1563, %v1631
      %v1664 = vadd.f32 %v1564, %v1632
      %v1665 = vadd.f32 %v1565, %v1633
      %v1666 = vadd.f32 %v1566, %v1634
      %v1667 = vadd.f32 %v1567, %v1635
      %v1668 = vadd.f32 %v1568, %v1636
      %v1669 = vadd.f32 %v1569, %v1637
      %v1670 = vadd.f32 %v1570, %v1638
      %v1671 = vadd.f32 %v1571, %v1639
      %v1672 = vadd.f32 %v1572, %v1640
      %v1673 = vadd.f32 %v1573, %v1641
      %v1674 = vadd.f32 %v1574, %v1642
      %v1675 = vadd.f32 %v1575, %v1643
      %v1676 = vadd.f32 %v1576, %v1644
      %v1677 = vadd.f32 %v1577, %v1645
      %v1678 = vadd.f32 %v1578, %v1646
      %v1679 = vadd.f32 %v1579, %v1647
      %v1680 = vadd.f32 %v1580, %v1648
      %v1681 = vadd.f32 %v1581, %v1649
      %v1682 = vadd.f32 %v1582, %v1650
      %v1683 = vadd.f32 %v1583, %v1651
      %v1684 = vadd.f32 %v1584, %v1652
      %v1685 = vadd.f32 %v1585, %v1653
      %v1686 = vadd.f32 %v1586, %v1654
      %v1687 = vadd.f32 %v1587, %v1655
      %v1688 = vadd.f32 %v1588, %v1656
      %v1689 = vadd.f32 %v1589, %v1657
      %v1690 = vadd.f32 %v1590, %v1658
      %v1691 = vmax.f32 %v1659, 0.0
      %v1692 = vmax.f32 %v1660, 0.0
      %v1693 = vmax.f32 %v1661, 0.0
      %v1694 = vmax.f32 %v1662, 0.0
      %v1695 = vmax.f32 %v1663, 0.0
      %v1696 = vmax.f32 %v1664, 0.0
      %v1697 = vmax.f32 %v1665, 0.0
      %v1698 = vmax.f32 %v1666, 0.0
      %v1699 = vmax.f32 %v1667, 0.0
      %v1700 = vmax.f32 %v1668, 0.0
      %v1701 = vmax.f32 %v1669, 0.0
      %v1702 = vmax.f32 %v1670, 0.0
      %v1703 = vmax.f32 %v1671, 0.0
      %v1704 = vmax.f32 %v1672, 0.0
      %v1705 = vmax.f32 %v1673, 0.0
      %v1706 = vmax.f32 %v1674, 0.0
      %v1707 = vmax.f32 %v1675, 0.0
      %v1708 = vmax.f32 %v1676, 0.0
      %v1709 = vmax.f32 %v1677, 0.0
      %v1710 = vmax.f32 %v1678, 0.0
      %v1711 = vmax.f32 %v1679, 0.0
      %v1712 = vmax.f32 %v1680, 0.0
      %v1713 = vmax.f32 %v1681, 0.0
      %v1714 = vmax.f32 %v1682, 0.0
      %v1715 = vmax.f32 %v1683, 0.0
      %v1716 = vmax.f32 %v1684, 0.0
      %v1717 = vmax.f32 %v1685, 0.0
      %v1718 = vmax.f32 %v1686, 0.0
      %v1719 = vmax.f32 %v1687, 0.0
      %v1720 = vmax.f32 %v1688, 0.0
      %v1721 = vmax.f32 %v1689, 0.0
      %v1722 = vmax.f32 %v1690, 0.0
      %v1723 = vmin.f32 %v1691, 6.0
      %v1724 = vmin.f32 %v1692, 6.0
      %v1725 = vmin.f32 %v1693, 6.0
      %v1726 = vmin.f32 %v1694, 6.0
      %v1727 = vmin.f32 %v1695, 6.0
      %v1728 = vmin.f32 %v1696, 6.0
      %v1729 = vmin.f32 %v1697, 6.0
      %v1730 = vmin.f32 %v1698, 6.0
      %v1731 = vmin.f32 %v1699, 6.0
      %v1732 = vmin.f32 %v1700, 6.0
      %v1733 = vmin.f32 %v1701, 6.0
      %v1734 = vmin.f32 %v1702, 6.0
      %v1735 = vmin.f32 %v1703, 6.0
      %v1736 = vmin.f32 %v1704, 6.0
      %v1737 = vmin.f32 %v1705, 6.0
      %v1738 = vmin.f32 %v1706, 6.0
      %v1739 = vmin.f32 %v1707, 6.0
      %v1740 = vmin.f32 %v1708, 6.0
      %v1741 = vmin.f32 %v1709, 6.0
      %v1742 = vmin.f32 %v1710, 6.0
      %v1743 = vmin.f32 %v1711, 6.0
      %v1744 = vmin.f32 %v1712, 6.0
      %v1745 = vmin.f32 %v1713, 6.0
      %v1746 = vmin.f32 %v1714, 6.0
      %v1747 = vmin.f32 %v1715, 6.0
      %v1748 = vmin.f32 %v1716, 6.0
      %v1749 = vmin.f32 %v1717, 6.0
      %v1750 = vmin.f32 %v1718, 6.0
      %v1751 = vmin.f32 %v1719, 6.0
      %v1752 = vmin.f32 %v1720, 6.0
      %v1753 = vmin.f32 %v1721, 6.0
      %v1754 = vmin.f32 %v1722, 6.0
      %v1755 = vpack.c.bf16 %v1724, %v1723
      %v1756 = vpack.c.bf16 %v1726, %v1725
      %v1757 = vpack.c.bf16 %v1728, %v1727
      %v1758 = vpack.c.bf16 %v1730, %v1729
      %v1759 = vpack.c.bf16 %v1732, %v1731
      %v1760 = vpack.c.bf16 %v1734, %v1733
      %v1761 = vpack.c.bf16 %v1736, %v1735
      %v1762 = vpack.c.bf16 %v1738, %v1737
      %v1763 = vpack.c.bf16 %v1740, %v1739
      %v1764 = vpack.c.bf16 %v1742, %v1741
      %v1765 = vpack.c.bf16 %v1744, %v1743
      %v1766 = vpack.c.bf16 %v1746, %v1745
      %v1767 = vpack.c.bf16 %v1748, %v1747
      %v1768 = vpack.c.bf16 %v1750, %v1749
      %v1769 = vpack.c.bf16 %v1752, %v1751
      %v1770 = vpack.c.bf16 %v1754, %v1753
      %v1771 = vld [vmem:[%s5] sm:$0xf]
      %v1772 = vld [vmem:[%s5 + $0x4] sm:$0xf]
      %v1773 = vld [vmem:[%s5 + $0x8] sm:$0xf]
      %v1774 = vld [vmem:[%s5 + $0xc] sm:$0xf]
      %v1775 = vld [vmem:[%s5 + $0x10] sm:$0xf]
      %v1776 = vld [vmem:[%s5 + $0x14] sm:$0xf]
      %v1777 = vld [vmem:[%s5 + $0x18] sm:$0xf]
      %v1778 = vld [vmem:[%s5 + $0x1c] sm:$0xf]
      %v1779 = vld [vmem:[%s5 + $0x20] sm:$0xf]
      %v1780 = vld [vmem:[%s5 + $0x24] sm:$0xf]
      %v1781 = vld [vmem:[%s5 + $0x28] sm:$0xf]
      %v1782 = vld [vmem:[%s5 + $0x2c] sm:$0xf]
      %v1783 = vld [vmem:[%s5 + $0x30] sm:$0xf]
      %v1784 = vld [vmem:[%s5 + $0x34] sm:$0xf]
      %v1785 = vld [vmem:[%s5 + $0x38] sm:$0xf]
      %v1786 = vld [vmem:[%s5 + $0x3c] sm:$0xf]
      %v1787 = vld [vmem:[%s6] sm:$0x1]
      %v1789 = vlaneseq
      %v1790 = vshrl.u32 %v1789, 7
      %v1791 = vsub.s32 0, %v1790
      %v1792 = vrot.slane %v1787, %v1791
      %v1810 = vunpack.c.l.b16 %v1771
      %v1811 = vunpack.c.l.b16 %v1772
      %v1812 = vunpack.c.l.b16 %v1773
      %v1813 = vunpack.c.l.b16 %v1774
      %v1814 = vunpack.c.l.b16 %v1775
      %v1815 = vunpack.c.l.b16 %v1776
      %v1816 = vunpack.c.l.b16 %v1777
      %v1817 = vunpack.c.l.b16 %v1778
      %v1818 = vunpack.c.l.b16 %v1779
      %v1819 = vunpack.c.l.b16 %v1780
      %v1820 = vunpack.c.l.b16 %v1781
      %v1821 = vunpack.c.l.b16 %v1782
      %v1822 = vunpack.c.l.b16 %v1783
      %v1823 = vunpack.c.l.b16 %v1784
      %v1824 = vunpack.c.l.b16 %v1785
      %v1825 = vunpack.c.l.b16 %v1786
      %v1826 = vpack.c.b16 %v1811, %v1810
      %v1827 = vpack.c.b16 %v1813, %v1812
      %v1828 = vpack.c.b16 %v1815, %v1814
      %v1829 = vpack.c.b16 %v1817, %v1816
      %v1830 = vpack.c.b16 %v1819, %v1818
      %v1831 = vpack.c.b16 %v1821, %v1820
      %v1832 = vpack.c.b16 %v1823, %v1822
      %v1833 = vpack.c.b16 %v1825, %v1824
      %1842 = vmatprep.subr.bf16.mxu0 0
      %1843 = vmatpush1.bf16.msra.mxu0 %v1826
      %1844 = vmatprep.subr.bf16.mxu0 0
      %1845 = vmatpush1.bf16.msra.mxu0 %v1827
      %1846 = vmatprep.subr.bf16.mxu0 0
      %1847 = vmatpush1.bf16.msra.mxu0 %v1828
      %1848 = vmatprep.subr.bf16.mxu0 0
      %1849 = vmatpush1.bf16.msra.mxu0 %v1829
      %1850 = vmatprep.subr.bf16.mxu0 0
      %1851 = vmatpush1.bf16.msra.mxu0 %v1830
      %1852 = vmatprep.subr.bf16.mxu0 0
      %1853 = vmatpush1.bf16.msra.mxu0 %v1831
      %1854 = vmatprep.subr.bf16.mxu0 0
      %1855 = vmatpush1.bf16.msra.mxu0 %v1832
      %1856 = vmatprep.subr.bf16.mxu0 0
      %1857 = vmatpush1.bf16.msra.mxu0 %v1833
      %1858 = vmatprep.subr.bf16.mxu0 0
      %1859 = vmatpush1.bf16.msra.mxu0 0
      %1860 = vmatprep.subr.bf16.mxu0 0
      %1861 = vmatpush1.bf16.msra.mxu0 0
      %1862 = vmatprep.subr.bf16.mxu0 0
      %1863 = vmatpush1.bf16.msra.mxu0 0
      %1864 = vmatprep.subr.bf16.mxu0 0
      %1865 = vmatpush1.bf16.msra.mxu0 0
      %1866 = vmatprep.subr.bf16.mxu0 0
      %1867 = vmatpush1.bf16.msra.mxu0 0
      %1868 = vmatprep.subr.bf16.mxu0 0
      %1869 = vmatpush1.bf16.msra.mxu0 0
      %1870 = vmatprep.subr.bf16.mxu0 0
      %1871 = vmatpush1.bf16.msra.mxu0 0
      %1872 = vmatprep.subr.bf16.mxu0 0
      %1873 = vmatpush1.bf16.msra.mxu0 0
      %1874 = vmatprep.mubr.bf16.mxu0 0
      %1875 = vmatmul.mubr.bf16.gmra.mrb[0].mxu0 %v1755
      %v1876 = vpop.f32.mrb[0].mxu0
      %v1877 = vadd.f32 %v1792, %v1876
      %v1878 = vpop.f32.mrb[0].mxu0
      %v1879 = vpop.f32.mrb[0].mxu0
      %v1880 = vadd.f32 %v1792, %v1879
      %v1881 = vpop.f32.mrb[0].mxu0
      %1882 = vmatprep.mubr.bf16.mxu0 0
      %1883 = vmatmul.mubr.bf16.gmra.mrb[0].mxu0 %v1756
      %v1884 = vpop.f32.mrb[0].mxu0
      %v1885 = vadd.f32 %v1792, %v1884
      %v1886 = vpop.f32.mrb[0].mxu0
      %v1887 = vpop.f32.mrb[0].mxu0
      %v1888 = vadd.f32 %v1792, %v1887
      %v1889 = vpop.f32.mrb[0].mxu0
      %1890 = vmatprep.mubr.bf16.mxu0 0
      %1891 = vmatmul.mubr.bf16.gmra.mrb[0].mxu0 %v1757
      %v1892 = vpop.f32.mrb[0].mxu0
      %v1893 = vadd.f32 %v1792, %v1892
      %v1894 = vpop.f32.mrb[0].mxu0
      %v1895 = vpop.f32.mrb[0].mxu0
      %v1896 = vadd.f32 %v1792, %v1895
      %v1897 = vpop.f32.mrb[0].mxu0
      %1898 = vmatprep.mubr.bf16.mxu0 0
      %1899 = vmatmul.mubr.bf16.gmra.mrb[0].mxu0 %v1758
      %v1900 = vpop.f32.mrb[0].mxu0
      %v1901 = vadd.f32 %v1792, %v1900
      %v1902 = vpop.f32.mrb[0].mxu0
      %v1903 = vpop.f32.mrb[0].mxu0
      %v1904 = vadd.f32 %v1792, %v1903
      %v1905 = vpop.f32.mrb[0].mxu0
      %1906 = vmatprep.mubr.bf16.mxu0 0
      %1907 = vmatmul.mubr.bf16.gmra.mrb[0].mxu0 %v1759
      %v1908 = vpop.f32.mrb[0].mxu0
      %v1909 = vadd.f32 %v1792, %v1908
      %v1910 = vpop.f32.mrb[0].mxu0
      %v1911 = vpop.f32.mrb[0].mxu0
      %v1912 = vadd.f32 %v1792, %v1911
      %v1913 = vpop.f32.mrb[0].mxu0
      %1914 = vmatprep.mubr.bf16.mxu0 0
      %1915 = vmatmul.mubr.bf16.gmra.mrb[0].mxu0 %v1760
      %v1916 = vpop.f32.mrb[0].mxu0
      %v1917 = vadd.f32 %v1792, %v1916
      %v1918 = vpop.f32.mrb[0].mxu0
      %v1919 = vpop.f32.mrb[0].mxu0
      %v1920 = vadd.f32 %v1792, %v1919
      %v1921 = vpop.f32.mrb[0].mxu0
      %1922 = vmatprep.mubr.bf16.mxu0 0
      %1923 = vmatmul.mubr.bf16.gmra.mrb[0].mxu0 %v1761
      %v1924 = vpop.f32.mrb[0].mxu0
      %v1925 = vadd.f32 %v1792, %v1924
      %v1926 = vpop.f32.mrb[0].mxu0
      %v1927 = vpop.f32.mrb[0].mxu0
      %v1928 = vadd.f32 %v1792, %v1927
      %v1929 = vpop.f32.mrb[0].mxu0
      %1930 = vmatprep.mubr.bf16.mxu0 0
      %1931 = vmatmul.mubr.bf16.gmra.mrb[0].mxu0 %v1762
      %v1932 = vpop.f32.mrb[0].mxu0
      %v1933 = vadd.f32 %v1792, %v1932
      %v1934 = vpop.f32.mrb[0].mxu0
      %v1935 = vpop.f32.mrb[0].mxu0
      %v1936 = vadd.f32 %v1792, %v1935
      %v1937 = vpop.f32.mrb[0].mxu0
      %1938 = vmatprep.mubr.bf16.mxu0 0
      %1939 = vmatmul.mubr.bf16.gmra.mrb[0].mxu0 %v1763
      %v1940 = vpop.f32.mrb[0].mxu0
      %v1941 = vadd.f32 %v1792, %v1940
      %v1942 = vpop.f32.mrb[0].mxu0
      %v1943 = vpop.f32.mrb[0].mxu0
      %v1944 = vadd.f32 %v1792, %v1943
      %v1945 = vpop.f32.mrb[0].mxu0
      %1946 = vmatprep.mubr.bf16.mxu0 0
      %1947 = vmatmul.mubr.bf16.gmra.mrb[0].mxu0 %v1764
      %v1948 = vpop.f32.mrb[0].mxu0
      %v1949 = vadd.f32 %v1792, %v1948
      %v1950 = vpop.f32.mrb[0].mxu0
      %v1951 = vpop.f32.mrb[0].mxu0
      %v1952 = vadd.f32 %v1792, %v1951
      %v1953 = vpop.f32.mrb[0].mxu0
      %1954 = vmatprep.mubr.bf16.mxu0 0
      %1955 = vmatmul.mubr.bf16.gmra.mrb[0].mxu0 %v1765
      %v1956 = vpop.f32.mrb[0].mxu0
      %v1957 = vadd.f32 %v1792, %v1956
      %v1958 = vpop.f32.mrb[0].mxu0
      %v1959 = vpop.f32.mrb[0].mxu0
      %v1960 = vadd.f32 %v1792, %v1959
      %v1961 = vpop.f32.mrb[0].mxu0
      %1962 = vmatprep.mubr.bf16.mxu0 0
      %1963 = vmatmul.mubr.bf16.gmra.mrb[0].mxu0 %v1766
      %v1964 = vpop.f32.mrb[0].mxu0
      %v1965 = vadd.f32 %v1792, %v1964
      %v1966 = vpop.f32.mrb[0].mxu0
      %v1967 = vpop.f32.mrb[0].mxu0
      %v1968 = vadd.f32 %v1792, %v1967
      %v1969 = vpop.f32.mrb[0].mxu0
      %1970 = vmatprep.mubr.bf16.mxu0 0
      %1971 = vmatmul.mubr.bf16.gmra.mrb[0].mxu0 %v1767
      %v1972 = vpop.f32.mrb[0].mxu0
      %v1973 = vadd.f32 %v1792, %v1972
      %v1974 = vpop.f32.mrb[0].mxu0
      %v1975 = vpop.f32.mrb[0].mxu0
      %v1976 = vadd.f32 %v1792, %v1975
      %v1977 = vpop.f32.mrb[0].mxu0
      %1978 = vmatprep.mubr.bf16.mxu0 0
      %1979 = vmatmul.mubr.bf16.gmra.mrb[0].mxu0 %v1768
      %v1980 = vpop.f32.mrb[0].mxu0
      %v1981 = vadd.f32 %v1792, %v1980
      %v1982 = vpop.f32.mrb[0].mxu0
      %v1983 = vpop.f32.mrb[0].mxu0
      %v1984 = vadd.f32 %v1792, %v1983
      %v1985 = vpop.f32.mrb[0].mxu0
      %1986 = vmatprep.mubr.bf16.mxu0 0
      %1987 = vmatmul.mubr.bf16.gmra.mrb[0].mxu0 %v1769
      %v1988 = vpop.f32.mrb[0].mxu0
      %v1989 = vadd.f32 %v1792, %v1988
      %v1990 = vpop.f32.mrb[0].mxu0
      %v1991 = vpop.f32.mrb[0].mxu0
      %v1992 = vadd.f32 %v1792, %v1991
      %v1993 = vpop.f32.mrb[0].mxu0
      %1994 = vmatprep.mubr.bf16.mxu0 0
      %1995 = vmatmul.mubr.bf16.gmra.mrb[0].mxu0 %v1770
      %v1996 = vpop.f32.mrb[0].mxu0
      %v1997 = vadd.f32 %v1792, %v1996
      %v1998 = vpop.f32.mrb[0].mxu0
      %v1999 = vpop.f32.mrb[0].mxu0
      %v2000 = vadd.f32 %v1792, %v1999
      %v2001 = vpop.f32.mrb[0].mxu0
      %2002 = vdwg.mxu0
      %v2003 = vunpack.c.l.bf16 %v280
      %v2004 = vunpack.c.l.bf16 %v281
      %v2005 = vunpack.c.l.bf16 %v282
      %v2006 = vunpack.c.l.bf16 %v283
      %v2007 = vunpack.c.l.bf16 %v284
      %v2008 = vunpack.c.l.bf16 %v285
      %v2009 = vunpack.c.l.bf16 %v286
      %v2010 = vunpack.c.l.bf16 %v287
      %v2011 = vunpack.c.l.bf16 %v288
      %v2012 = vunpack.c.l.bf16 %v289
      %v2013 = vunpack.c.l.bf16 %v290
      %v2014 = vunpack.c.l.bf16 %v291
      %v2015 = vunpack.c.l.bf16 %v292
      %v2016 = vunpack.c.l.bf16 %v293
      %v2017 = vunpack.c.l.bf16 %v294
      %v2018 = vunpack.c.l.bf16 %v295
      %v2019 = vunpack.c.l.bf16 %v296
      %v2020 = vunpack.c.l.bf16 %v297
      %v2021 = vunpack.c.l.bf16 %v298
      %v2022 = vunpack.c.l.bf16 %v299
      %v2023 = vunpack.c.l.bf16 %v300
      %v2024 = vunpack.c.l.bf16 %v301
      %v2025 = vunpack.c.l.bf16 %v302
      %v2026 = vunpack.c.l.bf16 %v303
      %v2027 = vunpack.c.l.bf16 %v304
      %v2028 = vunpack.c.l.bf16 %v305
      %v2029 = vunpack.c.l.bf16 %v306
      %v2030 = vunpack.c.l.bf16 %v307
      %v2031 = vunpack.c.l.bf16 %v308
      %v2032 = vunpack.c.l.bf16 %v309
      %v2033 = vunpack.c.l.bf16 %v310
      %v2034 = vunpack.c.l.bf16 %v311
      %v2035 = vadd.f32 %v1877, %v2003
      %v2036 = vadd.f32 %v1880, %v2004
      %v2037 = vadd.f32 %v1885, %v2005
      %v2038 = vadd.f32 %v1888, %v2006
      %v2039 = vadd.f32 %v1893, %v2007
      %v2040 = vadd.f32 %v1896, %v2008
      %v2041 = vadd.f32 %v1901, %v2009
      %v2042 = vadd.f32 %v1904, %v2010
      %v2043 = vadd.f32 %v1909, %v2011
      %v2044 = vadd.f32 %v1912, %v2012
      %v2045 = vadd.f32 %v1917, %v2013
      %v2046 = vadd.f32 %v1920, %v2014
      %v2047 = vadd.f32 %v1925, %v2015
      %v2048 = vadd.f32 %v1928, %v2016
      %v2049 = vadd.f32 %v1933, %v2017
      %v2050 = vadd.f32 %v1936, %v2018
      %v2051 = vadd.f32 %v1941, %v2019
      %v2052 = vadd.f32 %v1944, %v2020
      %v2053 = vadd.f32 %v1949, %v2021
      %v2054 = vadd.f32 %v1952, %v2022
      %v2055 = vadd.f32 %v1957, %v2023
      %v2056 = vadd.f32 %v1960, %v2024
      %v2057 = vadd.f32 %v1965, %v2025
      %v2058 = vadd.f32 %v1968, %v2026
      %v2059 = vadd.f32 %v1973, %v2027
      %v2060 = vadd.f32 %v1976, %v2028
      %v2061 = vadd.f32 %v1981, %v2029
      %v2062 = vadd.f32 %v1984, %v2030
      %v2063 = vadd.f32 %v1989, %v2031
      %v2064 = vadd.f32 %v1992, %v2032
      %v2065 = vadd.f32 %v1997, %v2033
      %v2066 = vadd.f32 %v2000, %v2034
      %v2067 = vpack.c.bf16 %v2036, %v2035
      %v2068 = vpack.c.bf16 %v2038, %v2037
      %v2069 = vpack.c.bf16 %v2040, %v2039
      %v2070 = vpack.c.bf16 %v2042, %v2041
      %v2071 = vpack.c.bf16 %v2044, %v2043
      %v2072 = vpack.c.bf16 %v2046, %v2045
      %v2073 = vpack.c.bf16 %v2048, %v2047
      %v2074 = vpack.c.bf16 %v2050, %v2049
      %v2075 = vpack.c.bf16 %v2052, %v2051
      %v2076 = vpack.c.bf16 %v2054, %v2053
      %v2077 = vpack.c.bf16 %v2056, %v2055
      %v2078 = vpack.c.bf16 %v2058, %v2057
      %v2079 = vpack.c.bf16 %v2060, %v2059
      %v2080 = vpack.c.bf16 %v2062, %v2061
      %v2081 = vpack.c.bf16 %v2064, %v2063
      %v2082 = vpack.c.bf16 %v2066, %v2065
      %v2099 = vunpack.c.l.b16 %v2067
      %v2100 = vunpack.c.h.b16 %v2067
      %v2101 = vunpack.c.l.b16 %v2068
      %v2102 = vunpack.c.h.b16 %v2068
      %v2103 = vunpack.c.l.b16 %v2069
      %v2104 = vunpack.c.h.b16 %v2069
      %v2105 = vunpack.c.l.b16 %v2070
      %v2106 = vunpack.c.h.b16 %v2070
      %v2107 = vunpack.c.l.b16 %v2071
      %v2108 = vunpack.c.h.b16 %v2071
      %v2109 = vunpack.c.l.b16 %v2072
      %v2110 = vunpack.c.h.b16 %v2072
      %v2111 = vunpack.c.l.b16 %v2073
      %v2112 = vunpack.c.h.b16 %v2073
      %v2113 = vunpack.c.l.b16 %v2074
      %v2114 = vunpack.c.h.b16 %v2074
      %v2115 = vunpack.c.l.b16 %v2075
      %v2116 = vunpack.c.h.b16 %v2075
      %v2117 = vunpack.c.l.b16 %v2076
      %v2118 = vunpack.c.h.b16 %v2076
      %v2119 = vunpack.c.l.b16 %v2077
      %v2120 = vunpack.c.h.b16 %v2077
      %v2121 = vunpack.c.l.b16 %v2078
      %v2122 = vunpack.c.h.b16 %v2078
      %v2123 = vunpack.c.l.b16 %v2079
      %v2124 = vunpack.c.h.b16 %v2079
      %v2125 = vunpack.c.l.b16 %v2080
      %v2126 = vunpack.c.h.b16 %v2080
      %v2127 = vunpack.c.l.b16 %v2081
      %v2128 = vunpack.c.h.b16 %v2081
      %v2129 = vunpack.c.l.b16 %v2082
      %v2130 = vunpack.c.h.b16 %v2082
      %v2131 = vpack.c.b16 %v2099, %v2099
      %v2132 = vpack.c.b16 %v2100, %v2100
      %v2133 = vpack.c.b16 %v2101, %v2101
      %v2134 = vpack.c.b16 %v2102, %v2102
      %v2135 = vpack.c.b16 %v2103, %v2103
      %v2136 = vpack.c.b16 %v2104, %v2104
      %v2137 = vpack.c.b16 %v2105, %v2105
      %v2138 = vpack.c.b16 %v2106, %v2106
      %v2139 = vpack.c.b16 %v2107, %v2107
      %v2140 = vpack.c.b16 %v2108, %v2108
      %v2141 = vpack.c.b16 %v2109, %v2109
      %v2142 = vpack.c.b16 %v2110, %v2110
      %v2143 = vpack.c.b16 %v2111, %v2111
      %v2144 = vpack.c.b16 %v2112, %v2112
      %v2145 = vpack.c.b16 %v2113, %v2113
      %v2146 = vpack.c.b16 %v2114, %v2114
      %v2147 = vpack.c.b16 %v2115, %v2115
      %v2148 = vpack.c.b16 %v2116, %v2116
      %v2149 = vpack.c.b16 %v2117, %v2117
      %v2150 = vpack.c.b16 %v2118, %v2118
      %v2151 = vpack.c.b16 %v2119, %v2119
      %v2152 = vpack.c.b16 %v2120, %v2120
      %v2153 = vpack.c.b16 %v2121, %v2121
      %v2154 = vpack.c.b16 %v2122, %v2122
      %v2155 = vpack.c.b16 %v2123, %v2123
      %v2156 = vpack.c.b16 %v2124, %v2124
      %v2157 = vpack.c.b16 %v2125, %v2125
      %v2158 = vpack.c.b16 %v2126, %v2126
      %v2159 = vpack.c.b16 %v2127, %v2127
      %v2160 = vpack.c.b16 %v2128, %v2128
      %v2161 = vpack.c.b16 %v2129, %v2129
      %v2162 = vpack.c.b16 %v2130, %v2130
      %2195 = vst [vmem:[%s278] sm:$0xf] %v2131
      %2196 = vst [vmem:[%s278 + $0x4] sm:$0xf] %v2132
      %2197 = vst [vmem:[%s278 + $0x8] sm:$0xf] %v2133
      %2198 = vst [vmem:[%s278 + $0xc] sm:$0xf] %v2134
      %2199 = vst [vmem:[%s278 + $0x10] sm:$0xf] %v2135
      %2200 = vst [vmem:[%s278 + $0x14] sm:$0xf] %v2136
      %2201 = vst [vmem:[%s278 + $0x18] sm:$0xf] %v2137
      %2202 = vst [vmem:[%s278 + $0x1c] sm:$0xf] %v2138
      %2203 = vst [vmem:[%s278 + $0x20] sm:$0xf] %v2139
      %2204 = vst [vmem:[%s278 + $0x24] sm:$0xf] %v2140
      %2205 = vst [vmem:[%s278 + $0x28] sm:$0xf] %v2141
      %2206 = vst [vmem:[%s278 + $0x2c] sm:$0xf] %v2142
      %2207 = vst [vmem:[%s278 + $0x30] sm:$0xf] %v2143
      %2208 = vst [vmem:[%s278 + $0x34] sm:$0xf] %v2144
      %2209 = vst [vmem:[%s278 + $0x38] sm:$0xf] %v2145
      %2210 = vst [vmem:[%s278 + $0x3c] sm:$0xf] %v2146
      %2211 = vst [vmem:[%s278 + $0x40] sm:$0xf] %v2147
      %2212 = vst [vmem:[%s278 + $0x44] sm:$0xf] %v2148
      %2213 = vst [vmem:[%s278 + $0x48] sm:$0xf] %v2149
      %2214 = vst [vmem:[%s278 + $0x4c] sm:$0xf] %v2150
      %2215 = vst [vmem:[%s278 + $0x50] sm:$0xf] %v2151
      %2216 = vst [vmem:[%s278 + $0x54] sm:$0xf] %v2152
      %2217 = vst [vmem:[%s278 + $0x58] sm:$0xf] %v2153
      %2218 = vst [vmem:[%s278 + $0x5c] sm:$0xf] %v2154
      %2219 = vst [vmem:[%s278 + $0x60] sm:$0xf] %v2155
      %2220 = vst [vmem:[%s278 + $0x64] sm:$0xf] %v2156
      %2221 = vst [vmem:[%s278 + $0x68] sm:$0xf] %v2157
      %2222 = vst [vmem:[%s278 + $0x6c] sm:$0xf] %v2158
      %2223 = vst [vmem:[%s278 + $0x70] sm:$0xf] %v2159
      %2224 = vst [vmem:[%s278 + $0x74] sm:$0xf] %v2160
      %2225 = vst [vmem:[%s278 + $0x78] sm:$0xf] %v2161
      %2226 = vst [vmem:[%s278 + $0x7c] sm:$0xf] %v2162
      %p2227 = scmp.lt.s32.totalorder %s18, 1
      %s2228 = scalar_select %p2227, %s18, 1
      %s2229 = smul.addr %s2228, 32
      %s2230 = smul.addr %s2229, 4
      %s2231 = scalar_lea.vmem %s7, %s2230
      // Predicated region
      $region49: #{inverted_residual_forward.1} parent=47 // pred_check
        %p2232 = pneg %p188
      $region50: #{inverted_residual_forward.1} parent=47 // pred_check_branch
        %2234 = sbr.rel (%p2232) target = $region52
      $region51: #{inverted_residual_forward.1} parent=47 // pred_region
        _
      $region52: #{inverted_residual_forward.1} parent=47 // pred_fallthru
        _
    $region48: #{inverted_residual_forward.1} parent=5 // pred_fallthru
      _
    %p2235 = scmp.le.s32.totalorder 2, %s13
    // Predicated region
    $region53: #{inverted_residual_forward.1} parent=5 // pred_check
      %p2236 = pneg %p2235
    $region54: #{inverted_residual_forward.1} parent=5 // pred_check_branch
      %2238 = sbr.rel (%p2236) target = $region56
    $region55: #{inverted_residual_forward.1} parent=5 // pred_region
      %s2239 = ssub.s32 %s13, 2
      // Predicated region
      $region57: #{inverted_residual_forward.1} parent=55 // pred_check
        %p2240 = pneg %p194
      $region58: #{inverted_residual_forward.1} parent=55 // pred_check_branch
        %2242 = sbr.rel (%p2240) target = $region60
      $region59: #{inverted_residual_forward.1} parent=55 // pred_region
        %p2243 = scmp.lt.s32.totalorder %s19, 1
        %s2244 = scalar_select %p2243, %s19, 1
        %s2245 = smul.addr %s2244, 32
        %s2246 = smul.addr %s2245, 4
        %s2247 = scalar_lea.vmem %s7, %s2246
      $region60: #{inverted_residual_forward.1} parent=55 // pred_fallthru
        _
    $region56: #{inverted_residual_forward.1} parent=5 // pred_fallthru
      _
  $region6: #{inverted_residual_forward.1} parent=0 // loop_footer
    %s17 = sadd.s32 1, %s13
  $region7: #{inverted_residual_forward.1} parent=0 // loop_footer_branch
    %12 = sbr.rel target = $region3
  $region8: #{inverted_residual_forward.1} parent=0 // loop_exit
    _

</llo_original>
